<compile_context>
chip_gen: v5e
topology: v5e:2x2
jax: 0.10.0
libtpu: 0.0.40
codegen_flags: <defaults>
</compile_context>

<pallas_src>
import functools

import jax
import jax.numpy as jnp
from jax.experimental import pallas as pl
from jax.experimental.pallas import tpu as pltpu

INPUT_DIM = 784
HIDDEN_DIM = 200
LATENT_DIM = 20

HIDDEN_PAD = 256      # padded hidden width (clean MXU N / K)
OUT_PAD = 128         # padded fused-head output width (lane-dense stores)


def _round_up(n, m):
    return ((n + m - 1) // m) * m


def _encoder_kernel(x_ref, w1_ref, b1_ref, wh_ref, bh_ref, out_ref):
    # x: [TILE_B, INPUT_DIM] f32 (cast to bf16 here, on the VPU, hidden under
    # the MXU/DMA).  Weights bf16, biases f32, accumulation f32.
    x = x_ref[...].astype(jnp.bfloat16)

    # Linear(784 -> 256pad) + bias + ReLU.  Pad columns have zero weight/bias.
    h = jnp.dot(x, w1_ref[...], preferred_element_type=jnp.float32)
    h = jnp.maximum(h + b1_ref[...], 0.0)                   # [TILE_B, 256] f32

    # Fused heads: Linear(256pad -> 128pad) covering [mu | logvar | zeros].
    z = jnp.dot(h.astype(wh_ref.dtype), wh_ref[...],
                preferred_element_type=jnp.float32)
    z = z + bh_ref[...]                                      # [TILE_B, 128] f32

    # sigma = exp(0.5 * logvar) on lanes [LATENT_DIM, 2*LATENT_DIM); mask on
    # lane index so no sub-128-lane slicing/concat happens inside the kernel.
    # (Pad lanes >= 2*LATENT_DIM also take the exp branch -> exp(0)=1; they are
    #  discarded by the wrapper slice, so this is benign.)
    col = jax.lax.broadcasted_iota(jnp.int32, z.shape, 1)
    out = jnp.where(col >= LATENT_DIM, jnp.exp(0.5 * z), z)

    out_ref[...] = out.astype(out_ref.dtype)


def pack_params(params):
    """One-time conversion of PyTorch-layout params to the kernel layout.

    Returns bf16 [in, out] weights (heads fused, zero-padded to HIDDEN_PAD /
    OUT_PAD) and f32 [1, out] biases.  Do this once at init / load time, NOT
    per forward call.
    """
    # Linear(784 -> 200), padded to [784, 256] / [1, 256].
    w1 = jnp.zeros((INPUT_DIM, HIDDEN_PAD), jnp.float32)
    w1 = w1.at[:, :HIDDEN_DIM].set(jnp.asarray(params["w1"]).T)
    b1 = jnp.zeros((1, HIDDEN_PAD), jnp.float32)
    b1 = b1.at[0, :HIDDEN_DIM].set(jnp.asarray(params["b1"]))

    # Fused heads Linear(200 -> 40), padded to [256, 128] / [1, 128].
    wh = jnp.zeros((HIDDEN_PAD, OUT_PAD), jnp.float32)
    wh = wh.at[:HIDDEN_DIM, :LATENT_DIM].set(jnp.asarray(params["w_mu"]).T)
    wh = wh.at[:HIDDEN_DIM, LATENT_DIM:2 * LATENT_DIM].set(
        jnp.asarray(params["w_logvar"]).T)
    bh = jnp.zeros((1, OUT_PAD), jnp.float32)
    bh = bh.at[0, :LATENT_DIM].set(jnp.asarray(params["b_mu"]))
    bh = bh.at[0, LATENT_DIM:2 * LATENT_DIM].set(jnp.asarray(params["b_logvar"]))

    return {
        "w1": w1.astype(jnp.bfloat16),
        "b1": b1,
        "wh": wh.astype(jnp.bfloat16),
        "bh": bh,
    }


@functools.partial(jax.jit, static_argnames=())
def encoder_forward(x, packed):
    """x: [B, INPUT_DIM] float32. packed: output of pack_params()."""
    B = x.shape[0]
    # Pad batch to a multiple of 128 rows, then pick the largest tile in
    # {512, 256, 128} that divides it.  Large batches get 512-row tiles
    # (amortizes the ~0.35 us per-grid-step overhead); small batches use one
    # padded 128-row tile.  VMEM at TILE_B=512: ~1.6 MiB/buffer of f32 x, well
    # under the scoped default on every generation (incl. v7x's 32 MiB).
    B_pad = _round_up(max(B, 1), 128)
    TILE_B = 128
    for cand in (512, 256):
        if B_pad % cand == 0:
            TILE_B = cand
            break

    x_p = x
    if B_pad != B:
        x_p = jnp.pad(x_p, ((0, B_pad - B), (0, 0)))
    # NOTE: no bf16 pre-cast here -- the kernel casts in-VMEM (halves x's HBM
    # traffic for this memory-bound kernel).

    grid = (B_pad // TILE_B,)

    out = pl.pallas_call(
        _encoder_kernel,
        out_shape=jax.ShapeDtypeStruct((B_pad, OUT_PAD), jnp.float32),
        grid=grid,
        in_specs=[
            # x tile marches over the batch; weights/biases are VMEM-resident
            # (constant block index across the whole grid).
            pl.BlockSpec((TILE_B, INPUT_DIM), lambda i: (i, 0)),
            pl.BlockSpec((INPUT_DIM, HIDDEN_PAD), lambda i: (0, 0)),
            pl.BlockSpec((1, HIDDEN_PAD), lambda i: (0, 0)),
            pl.BlockSpec((HIDDEN_PAD, OUT_PAD), lambda i: (0, 0)),
            pl.BlockSpec((1, OUT_PAD), lambda i: (0, 0)),
        ],
        out_specs=pl.BlockSpec((TILE_B, OUT_PAD), lambda i: (i, 0)),
        compiler_params=pltpu.CompilerParams(
            dimension_semantics=("parallel",)),
    )(x_p, packed["w1"], packed["b1"], packed["wh"], packed["bh"])

    mu = out[:B, :LATENT_DIM]
    sigma = out[:B, LATENT_DIM:2 * LATENT_DIM]
    return mu, sigma


def init_params(key):
    """Deterministic init matching nn.Linear shapes (PyTorch [out, in] layout)."""
    k1, k2, k3, k4, k5, k6 = jax.random.split(key, 6)

    def uniform_linear(kw, kb, fan_in, fan_out):
        bound = 1.0 / jnp.sqrt(float(fan_in))
        w = jax.random.uniform(kw, (fan_out, fan_in), jnp.float32, -bound, bound)
        b = jax.random.uniform(kb, (fan_out,), jnp.float32, -bound, bound)
        return w, b

    w1, b1 = uniform_linear(k1, k2, INPUT_DIM, HIDDEN_DIM)
    w_mu, b_mu = uniform_linear(k3, k4, HIDDEN_DIM, LATENT_DIM)
    w_lv, b_lv = uniform_linear(k5, k6, HIDDEN_DIM, LATENT_DIM)
    return {
        "w1": w1, "b1": b1,
        "w_mu": w_mu, "b_mu": b_mu,
        "w_logvar": w_lv, "b_logvar": b_lv,
    }


def encoder_reference(x, params):
    """Pure-JAX f32 reference matching the PyTorch module."""
    h = jnp.maximum(x @ params["w1"].T + params["b1"], 0.0)
    mu = h @ params["w_mu"].T + params["b_mu"]
    logvar = h @ params["w_logvar"].T + params["b_logvar"]
    sigma = jnp.exp(0.5 * logvar)
    return mu, sigma


if __name__ == "__main__":
    key = jax.random.PRNGKey(0)
    k_params, k_x = jax.random.split(key)

    B = 32  # small batch: pads to one 128-row tile
    params = init_params(k_params)
    packed = pack_params(params)  # one-time layout conversion (cached)
    x = jax.random.normal(k_x, (B, INPUT_DIM), dtype=jnp.float32)

    mu, sigma = encoder_forward(x, packed)
    jax.block_until_ready((mu, sigma))

    mu_ref, sigma_ref = encoder_reference(x, params)
    assert mu.shape == (B, LATENT_DIM) and sigma.shape == (B, LATENT_DIM)
    # bf16 MXU inputs with f32 accumulation -> ~0.5% relative error budget.
    assert jnp.allclose(mu, mu_ref, atol=3e-2, rtol=3e-2), \
        float(jnp.max(jnp.abs(mu - mu_ref)))
    assert jnp.allclose(sigma, sigma_ref, atol=3e-2, rtol=3e-2), \
        float(jnp.max(jnp.abs(sigma - sigma_ref)))

    print("KERNEL_OK")
</pallas_src>

<mosaic_0001>
module attributes {stable_mosaic.version = 11 : i64} {
  func.func @_encoder_kernel(%arg0: i32, %arg1: memref<128x784xf32, #tpu.memory_space<vmem>>, %arg2: memref<784x256xbf16, #tpu.memory_space<vmem>>, %arg3: memref<1x256xf32, #tpu.memory_space<vmem>>, %arg4: memref<256x128xbf16, #tpu.memory_space<vmem>>, %arg5: memref<1x128xf32, #tpu.memory_space<vmem>>, %arg6: memref<128x128xf32, #tpu.memory_space<vmem>>) attributes {dimension_semantics = [#tpu.dimension_semantics<parallel>], iteration_bounds = array<i64: 1>, scalar_prefetch = 0 : i64, scratch_operands = 0 : i64, tpu.core_type = #tpu.core_type<tc>, window_params = [{transform_indices = @transform_0, window_bounds = array<i64: 128, 784>}, {pipeline_mode = #tpu.pipeline_mode<synchronous>, transform_indices = @transform_1, window_bounds = array<i64: 784, 256>}, {pipeline_mode = #tpu.pipeline_mode<synchronous>, transform_indices = @transform_2, window_bounds = array<i64: 1, 256>}, {pipeline_mode = #tpu.pipeline_mode<synchronous>, transform_indices = @transform_3, window_bounds = array<i64: 256, 128>}, {pipeline_mode = #tpu.pipeline_mode<synchronous>, transform_indices = @transform_4, window_bounds = array<i64: 1, 128>}, {transform_indices = @transform_5, window_bounds = array<i64: 128, 128>}]} {
    %c0 = arith.constant 0 : index
    %c0_0 = arith.constant 0 : index
    %0 = vector.load %arg1[%c0, %c0_0] : memref<128x784xf32, #tpu.memory_space<vmem>>, vector<128x784xf32>
    %1 = arith.truncf %0 : vector<128x784xf32> to vector<128x784xbf16>
    %c0_1 = arith.constant 0 : index
    %c0_2 = arith.constant 0 : index
    %2 = vector.load %arg2[%c0_1, %c0_2] : memref<784x256xbf16, #tpu.memory_space<vmem>>, vector<784x256xbf16>
    %cst = arith.constant dense<0.000000e+00> : vector<128x256xf32>
    %3 = tpu.matmul %1, %2, %cst {dimension_numbers = #tpu.dot_dimension_numbers<[1], [0], [0], [1], [0, 0, 1, 1], [], []>} : vector<128x784xbf16>, vector<784x256xbf16>, vector<128x256xf32> -> vector<128x256xf32>
    %c0_3 = arith.constant 0 : index
    %c0_4 = arith.constant 0 : index
    %4 = vector.load %arg3[%c0_3, %c0_4] : memref<1x256xf32, #tpu.memory_space<vmem>>, vector<1x256xf32>
    %5 = vector.broadcast %4 : vector<1x256xf32> to vector<128x256xf32>
    %6 = arith.addf %3, %5 : vector<128x256xf32>
    %cst_5 = arith.constant 0.000000e+00 : f32
    %7 = vector.broadcast %cst_5 : f32 to vector<128x256xf32>
    %8 = arith.maximumf %6, %7 : vector<128x256xf32>
    %9 = arith.truncf %8 : vector<128x256xf32> to vector<128x256xbf16>
    %c0_6 = arith.constant 0 : index
    %c0_7 = arith.constant 0 : index
    %10 = vector.load %arg4[%c0_6, %c0_7] : memref<256x128xbf16, #tpu.memory_space<vmem>>, vector<256x128xbf16>
    %cst_8 = arith.constant dense<0.000000e+00> : vector<128x128xf32>
    %11 = tpu.matmul %9, %10, %cst_8 {dimension_numbers = #tpu.dot_dimension_numbers<[1], [0], [0], [1], [0, 0, 1, 1], [], []>} : vector<128x256xbf16>, vector<256x128xbf16>, vector<128x128xf32> -> vector<128x128xf32>
    %c0_9 = arith.constant 0 : index
    %c0_10 = arith.constant 0 : index
    %12 = vector.load %arg5[%c0_9, %c0_10] : memref<1x128xf32, #tpu.memory_space<vmem>>, vector<1x128xf32>
    %13 = vector.broadcast %12 : vector<1x128xf32> to vector<128x128xf32>
    %14 = arith.addf %11, %13 : vector<128x128xf32>
    %15 = tpu.iota {dimensions = array<i32: 1>} : vector<128x128xi32>
    %c20_i32 = arith.constant 20 : i32
    %16 = vector.broadcast %c20_i32 : i32 to vector<128x128xi32>
    %17 = arith.cmpi sge, %15, %16 : vector<128x128xi32>
    %cst_11 = arith.constant 5.000000e-01 : f32
    %18 = vector.broadcast %cst_11 : f32 to vector<128x128xf32>
    %19 = arith.mulf %18, %14 : vector<128x128xf32>
    %20 = math.exp %19 : vector<128x128xf32>
    %21 = arith.select %17, %20, %14 : vector<128x128xi1>, vector<128x128xf32>
    %c0_12 = arith.constant 0 : index
    %c0_13 = arith.constant 0 : index
    %22 = vector.load %arg6[%c0_12, %c0_13] : memref<128x128xf32, #tpu.memory_space<vmem>>, vector<128x128xf32>
    tpu.vector_store %arg6[%c0_12, %c0_13], %21 {strides = array<i32>} : memref<128x128xf32, #tpu.memory_space<vmem>>, vector<128x128xf32>,
    return
  }
  func.func @transform_0(%arg0: i32) -> (i32, i32) {
    %c0_i32 = arith.constant 0 : i32
    %c0_i32_0 = arith.constant 0 : i32
    return %arg0, %c0_i32 : i32, i32
  }
  func.func @transform_1(%arg0: i32) -> (i32, i32) {
    %c0_i32 = arith.constant 0 : i32
    %c0_i32_0 = arith.constant 0 : i32
    %c0_i32_1 = arith.constant 0 : i32
    return %c0_i32, %c0_i32_0 : i32, i32
  }
  func.func @transform_2(%arg0: i32) -> (i32, i32) {
    %c0_i32 = arith.constant 0 : i32
    %c0_i32_0 = arith.constant 0 : i32
    %c0_i32_1 = arith.constant 0 : i32
    return %c0_i32, %c0_i32_0 : i32, i32
  }
  func.func @transform_3(%arg0: i32) -> (i32, i32) {
    %c0_i32 = arith.constant 0 : i32
    %c0_i32_0 = arith.constant 0 : i32
    %c0_i32_1 = arith.constant 0 : i32
    return %c0_i32, %c0_i32_0 : i32, i32
  }
  func.func @transform_4(%arg0: i32) -> (i32, i32) {
    %c0_i32 = arith.constant 0 : i32
    %c0_i32_0 = arith.constant 0 : i32
    %c0_i32_1 = arith.constant 0 : i32
    return %c0_i32, %c0_i32_0 : i32, i32
  }
  func.func @transform_5(%arg0: i32) -> (i32, i32) {
    %c0_i32 = arith.constant 0 : i32
    %c0_i32_0 = arith.constant 0 : i32
    return %arg0, %c0_i32 : i32, i32
  }
}

</mosaic_0001>

<llo_original>
// kernel: encoder_forward.1
$region0: #{encoder_forward.1}
  #allocation0 [shape = 'u32[]', space=smem, size = 0x4, offset = 0x4, fixed_abs, tag = 'smem constant byte address 0x4 - core index']
  #allocation1 [shape = 'u32[72,128]{1,0:T(1,128)}', space=vmem, size = 0x9000, scoped, tag = 'internal scratch']
  %s0 = inlined_call_operand.vmem [shape: f32[128,784], index: 0, kind: input, shape index: {}]
  %s1 = inlined_call_operand.vmem [shape: bf16[784,256], index: 1, kind: input, shape index: {}]
  %s2 = inlined_call_operand.vmem [shape: f32[1,256], index: 2, kind: input, shape index: {}]
  %s3 = inlined_call_operand.vmem [shape: bf16[256,128], index: 3, kind: input, shape index: {}]
  %s4 = inlined_call_operand.vmem [shape: f32[1,128], index: 4, kind: input, shape index: {}]
  %s5 = inlined_call_operand.vmem [shape: f32[128,128], index: 5, kind: output, shape index: {}]
  %s6 = sld [smem:[#allocation0]]
  $region30: #{encoder_forward.1} parent=0
    _
  %s8 = ssub.s32 1, %s6
  %s9 = scalar_select 0, %s8, %s6
  // Predicated region
  $region2: #{encoder_forward.1} parent=0 // pred_check
    _
  $region3: #{encoder_forward.1} parent=0 // pred_check_branch
    %11 = sbr.rel (0) target = $region5
  $region4: #{encoder_forward.1} parent=0 // pred_region
    _
  $region5: #{encoder_forward.1} parent=0 // pred_fallthru
    _
  // Predicated region
  $region6: #{encoder_forward.1} parent=0 // pred_check
    _
  $region7: #{encoder_forward.1} parent=0 // pred_check_branch
    %13 = sbr.rel (0) target = $region9
  $region8: #{encoder_forward.1} parent=0 // pred_region
    _
  $region9: #{encoder_forward.1} parent=0 // pred_fallthru
    _
  // Predicated region
  $region10: #{encoder_forward.1} parent=0 // pred_check
    _
  $region11: #{encoder_forward.1} parent=0 // pred_check_branch
    %15 = sbr.rel (0) target = $region13
  $region12: #{encoder_forward.1} parent=0 // pred_region
    _
  $region13: #{encoder_forward.1} parent=0 // pred_fallthru
    _
  // Predicated region
  $region14: #{encoder_forward.1} parent=0 // pred_check
    _
  $region15: #{encoder_forward.1} parent=0 // pred_check_branch
    %17 = sbr.rel (0) target = $region17
  $region16: #{encoder_forward.1} parent=0 // pred_region
    _
  $region17: #{encoder_forward.1} parent=0 // pred_fallthru
    _
  // Predicated region
  $region18: #{encoder_forward.1} parent=0 // pred_check
    _
  $region19: #{encoder_forward.1} parent=0 // pred_check_branch
    %19 = sbr.rel (0) target = $region21
  $region20: #{encoder_forward.1} parent=0 // pred_region
    _
  $region21: #{encoder_forward.1} parent=0 // pred_fallthru
    _
  %v21 = vld [vmem:[%s0] sm:$0xff]
  %v22 = vld [vmem:[%s0 + $0x8] sm:$0xff]
  %v23 = vld [vmem:[%s0 + $0x10] sm:$0xff]
  %v24 = vld [vmem:[%s0 + $0x18] sm:$0xff]
  %v25 = vld [vmem:[%s0 + $0x20] sm:$0xff]
  %v26 = vld [vmem:[%s0 + $0x28] sm:$0xff]
  %v27 = vld [vmem:[%s0 + $0x30] sm:$0xff]
  %v28 = vld [vmem:[%s0 + $0x38] sm:$0xff]
  %v29 = vld [vmem:[%s0 + $0x40] sm:$0xff]
  %v30 = vld [vmem:[%s0 + $0x48] sm:$0xff]
  %v31 = vld [vmem:[%s0 + $0x50] sm:$0xff]
  %v32 = vld [vmem:[%s0 + $0x58] sm:$0xff]
  %v33 = vld [vmem:[%s0 + $0x60] sm:$0xff]
  %v34 = vld [vmem:[%s0 + $0x68] sm:$0xff]
  %v35 = vld [vmem:[%s0 + $0x70] sm:$0xff]
  %v36 = vld [vmem:[%s0 + $0x78] sm:$0xff]
  %v37 = vld [vmem:[%s0 + $0x80] sm:$0xff]
  %v38 = vld [vmem:[%s0 + $0x88] sm:$0xff]
  %v39 = vld [vmem:[%s0 + $0x90] sm:$0xff]
  %v40 = vld [vmem:[%s0 + $0x98] sm:$0xff]
  %v41 = vld [vmem:[%s0 + $0xa0] sm:$0xff]
  %v42 = vld [vmem:[%s0 + $0xa8] sm:$0xff]
  %v43 = vld [vmem:[%s0 + $0xb0] sm:$0xff]
  %v44 = vld [vmem:[%s0 + $0xb8] sm:$0xff]
  %v45 = vld [vmem:[%s0 + $0xc0] sm:$0xff]
  %v46 = vld [vmem:[%s0 + $0xc8] sm:$0xff]
  %v47 = vld [vmem:[%s0 + $0xd0] sm:$0xff]
  %v48 = vld [vmem:[%s0 + $0xd8] sm:$0xff]
  %v49 = vld [vmem:[%s0 + $0xe0] sm:$0xff]
  %v50 = vld [vmem:[%s0 + $0xe8] sm:$0xff]
  %v51 = vld [vmem:[%s0 + $0xf0] sm:$0xff]
  %v52 = vld [vmem:[%s0 + $0xf8] sm:$0xff]
  %v53 = vld [vmem:[%s0 + $0x100] sm:$0xff]
  %v54 = vld [vmem:[%s0 + $0x108] sm:$0xff]
  %v55 = vld [vmem:[%s0 + $0x110] sm:$0xff]
  %v56 = vld [vmem:[%s0 + $0x118] sm:$0xff]
  %v57 = vld [vmem:[%s0 + $0x120] sm:$0xff]
  %v58 = vld [vmem:[%s0 + $0x128] sm:$0xff]
  %v59 = vld [vmem:[%s0 + $0x130] sm:$0xff]
  %v60 = vld [vmem:[%s0 + $0x138] sm:$0xff]
  %v61 = vld [vmem:[%s0 + $0x140] sm:$0xff]
  %v62 = vld [vmem:[%s0 + $0x148] sm:$0xff]
  %v63 = vld [vmem:[%s0 + $0x150] sm:$0xff]
  %v64 = vld [vmem:[%s0 + $0x158] sm:$0xff]
  %v65 = vld [vmem:[%s0 + $0x160] sm:$0xff]
  %v66 = vld [vmem:[%s0 + $0x168] sm:$0xff]
  %v67 = vld [vmem:[%s0 + $0x170] sm:$0xff]
  %v68 = vld [vmem:[%s0 + $0x178] sm:$0xff]
  %v69 = vld [vmem:[%s0 + $0x180] sm:$0xff]
  %v70 = vld [vmem:[%s0 + $0x188] sm:$0xff]
  %v71 = vld [vmem:[%s0 + $0x190] sm:$0xff]
  %v72 = vld [vmem:[%s0 + $0x198] sm:$0xff]
  %v73 = vld [vmem:[%s0 + $0x1a0] sm:$0xff]
  %v74 = vld [vmem:[%s0 + $0x1a8] sm:$0xff]
  %v75 = vld [vmem:[%s0 + $0x1b0] sm:$0xff]
  %v76 = vld [vmem:[%s0 + $0x1b8] sm:$0xff]
  %v77 = vld [vmem:[%s0 + $0x1c0] sm:$0xff]
  %v78 = vld [vmem:[%s0 + $0x1c8] sm:$0xff]
  %v79 = vld [vmem:[%s0 + $0x1d0] sm:$0xff]
  %v80 = vld [vmem:[%s0 + $0x1d8] sm:$0xff]
  %v81 = vld [vmem:[%s0 + $0x1e0] sm:$0xff]
  %v82 = vld [vmem:[%s0 + $0x1e8] sm:$0xff]
  %v83 = vld [vmem:[%s0 + $0x1f0] sm:$0xff]
  %v84 = vld [vmem:[%s0 + $0x1f8] sm:$0xff]
  %v85 = vld [vmem:[%s0 + $0x200] sm:$0xff]
  %v86 = vld [vmem:[%s0 + $0x208] sm:$0xff]
  %v87 = vld [vmem:[%s0 + $0x210] sm:$0xff]
  %v88 = vld [vmem:[%s0 + $0x218] sm:$0xff]
  %v89 = vld [vmem:[%s0 + $0x220] sm:$0xff]
  %v90 = vld [vmem:[%s0 + $0x228] sm:$0xff]
  %v91 = vld [vmem:[%s0 + $0x230] sm:$0xff]
  %v92 = vld [vmem:[%s0 + $0x238] sm:$0xff]
  %v93 = vld [vmem:[%s0 + $0x240] sm:$0xff]
  %v94 = vld [vmem:[%s0 + $0x248] sm:$0xff]
  %v95 = vld [vmem:[%s0 + $0x250] sm:$0xff]
  %v96 = vld [vmem:[%s0 + $0x258] sm:$0xff]
  %v97 = vld [vmem:[%s0 + $0x260] sm:$0xff]
  %v98 = vld [vmem:[%s0 + $0x268] sm:$0xff]
  %v99 = vld [vmem:[%s0 + $0x270] sm:$0xff]
  %v100 = vld [vmem:[%s0 + $0x278] sm:$0xff]
  %v101 = vld [vmem:[%s0 + $0x280] sm:$0xff]
  %v102 = vld [vmem:[%s0 + $0x288] sm:$0xff]
  %v103 = vld [vmem:[%s0 + $0x290] sm:$0xff]
  %v104 = vld [vmem:[%s0 + $0x298] sm:$0xff]
  %v105 = vld [vmem:[%s0 + $0x2a0] sm:$0xff]
  %v106 = vld [vmem:[%s0 + $0x2a8] sm:$0xff]
  %v107 = vld [vmem:[%s0 + $0x2b0] sm:$0xff]
  %v108 = vld [vmem:[%s0 + $0x2b8] sm:$0xff]
  %v109 = vld [vmem:[%s0 + $0x2c0] sm:$0xff]
  %v110 = vld [vmem:[%s0 + $0x2c8] sm:$0xff]
  %v111 = vld [vmem:[%s0 + $0x2d0] sm:$0xff]
  %v112 = vld [vmem:[%s0 + $0x2d8] sm:$0xff]
  %v113 = vld [vmem:[%s0 + $0x2e0] sm:$0xff]
  %v114 = vld [vmem:[%s0 + $0x2e8] sm:$0xff]
  %v115 = vld [vmem:[%s0 + $0x2f0] sm:$0xff]
  %v116 = vld [vmem:[%s0 + $0x2f8] sm:$0xff]
  %v117 = vld [vmem:[%s0 + $0x300] sm:$0xff]
  %v118 = vld [vmem:[%s0 + $0x308] sm:$0xff]
  %v119 = vld [vmem:[%s0 + $0x310] sm:$0xff]
  %v120 = vld [vmem:[%s0 + $0x318] sm:$0xff]
  %v121 = vld [vmem:[%s0 + $0x320] sm:$0xff]
  %v122 = vld [vmem:[%s0 + $0x328] sm:$0xff]
  %v123 = vld [vmem:[%s0 + $0x330] sm:$0xff]
  %v124 = vld [vmem:[%s0 + $0x338] sm:$0xff]
  %v125 = vld [vmem:[%s0 + $0x340] sm:$0xff]
  %v126 = vld [vmem:[%s0 + $0x348] sm:$0xff]
  %v127 = vld [vmem:[%s0 + $0x350] sm:$0xff]
  %v128 = vld [vmem:[%s0 + $0x358] sm:$0xff]
  %v129 = vld [vmem:[%s0 + $0x360] sm:$0xff]
  %v130 = vld [vmem:[%s0 + $0x368] sm:$0xff]
  %v131 = vld [vmem:[%s0 + $0x370] sm:$0xff]
  %v132 = vld [vmem:[%s0 + $0x378] sm:$0xff]
  %v133 = vpack.c.bf16 %v28, %v21
  %v134 = vpack.c.bf16 %v29, %v22
  %v135 = vpack.c.bf16 %v30, %v23
  %v136 = vpack.c.bf16 %v31, %v24
  %v137 = vpack.c.bf16 %v32, %v25
  %v138 = vpack.c.bf16 %v33, %v26
  %v139 = vpack.c.bf16 %v34, %v27
  %v140 = vpack.c.bf16 %v42, %v35
  %v141 = vpack.c.bf16 %v43, %v36
  %v142 = vpack.c.bf16 %v44, %v37
  %v143 = vpack.c.bf16 %v45, %v38
  %v144 = vpack.c.bf16 %v46, %v39
  %v145 = vpack.c.bf16 %v47, %v40
  %v146 = vpack.c.bf16 %v48, %v41
  %v147 = vpack.c.bf16 %v56, %v49
  %v148 = vpack.c.bf16 %v57, %v50
  %v149 = vpack.c.bf16 %v58, %v51
  %v150 = vpack.c.bf16 %v59, %v52
  %v151 = vpack.c.bf16 %v60, %v53
  %v152 = vpack.c.bf16 %v61, %v54
  %v153 = vpack.c.bf16 %v62, %v55
  %v154 = vpack.c.bf16 %v70, %v63
  %v155 = vpack.c.bf16 %v71, %v64
  %v156 = vpack.c.bf16 %v72, %v65
  %v157 = vpack.c.bf16 %v73, %v66
  %v158 = vpack.c.bf16 %v74, %v67
  %v159 = vpack.c.bf16 %v75, %v68
  %v160 = vpack.c.bf16 %v76, %v69
  %v161 = vpack.c.bf16 %v84, %v77
  %v162 = vpack.c.bf16 %v85, %v78
  %v163 = vpack.c.bf16 %v86, %v79
  %v164 = vpack.c.bf16 %v87, %v80
  %v165 = vpack.c.bf16 %v88, %v81
  %v166 = vpack.c.bf16 %v89, %v82
  %v167 = vpack.c.bf16 %v90, %v83
  %v168 = vpack.c.bf16 %v98, %v91
  %v169 = vpack.c.bf16 %v99, %v92
  %v170 = vpack.c.bf16 %v100, %v93
  %v171 = vpack.c.bf16 %v101, %v94
  %v172 = vpack.c.bf16 %v102, %v95
  %v173 = vpack.c.bf16 %v103, %v96
  %v174 = vpack.c.bf16 %v104, %v97
  %v175 = vpack.c.bf16 %v112, %v105
  %v176 = vpack.c.bf16 %v113, %v106
  %v177 = vpack.c.bf16 %v114, %v107
  %v178 = vpack.c.bf16 %v115, %v108
  %v179 = vpack.c.bf16 %v116, %v109
  %v180 = vpack.c.bf16 %v117, %v110
  %v181 = vpack.c.bf16 %v118, %v111
  %v182 = vpack.c.bf16 %v126, %v119
  %v183 = vpack.c.bf16 %v127, %v120
  %v184 = vpack.c.bf16 %v128, %v121
  %v185 = vpack.c.bf16 %v129, %v122
  %v186 = vpack.c.bf16 %v130, %v123
  %v187 = vpack.c.bf16 %v131, %v124
  %v188 = vpack.c.bf16 %v132, %v125
  %v189 = vld [vmem:[%s1] sm:$0xff]
  %v190 = vld [vmem:[%s1 + $0x8] sm:$0xff]
  %v191 = vld [vmem:[%s1 + $0x10] sm:$0xff]
  %v192 = vld [vmem:[%s1 + $0x18] sm:$0xff]
  %v193 = vld [vmem:[%s1 + $0x20] sm:$0xff]
  %v194 = vld [vmem:[%s1 + $0x28] sm:$0xff]
  %v195 = vld [vmem:[%s1 + $0x30] sm:$0xff]
  %v196 = vld [vmem:[%s1 + $0x38] sm:$0xff]
  %v197 = vld [vmem:[%s1 + $0x40] sm:$0xff]
  %v198 = vld [vmem:[%s1 + $0x48] sm:$0xff]
  %v199 = vld [vmem:[%s1 + $0x50] sm:$0xff]
  %v200 = vld [vmem:[%s1 + $0x58] sm:$0xff]
  %v201 = vld [vmem:[%s1 + $0x60] sm:$0xff]
  %v202 = vld [vmem:[%s1 + $0x68] sm:$0xff]
  %v203 = vld [vmem:[%s1 + $0x70] sm:$0xff]
  %v204 = vld [vmem:[%s1 + $0x78] sm:$0xff]
  %v205 = vld [vmem:[%s1 + $0x80] sm:$0xff]
  %v206 = vld [vmem:[%s1 + $0x88] sm:$0xff]
  %v207 = vld [vmem:[%s1 + $0x90] sm:$0xff]
  %v208 = vld [vmem:[%s1 + $0x98] sm:$0xff]
  %v209 = vld [vmem:[%s1 + $0xa0] sm:$0xff]
  %v210 = vld [vmem:[%s1 + $0xa8] sm:$0xff]
  %v211 = vld [vmem:[%s1 + $0xb0] sm:$0xff]
  %v212 = vld [vmem:[%s1 + $0xb8] sm:$0xff]
  %v213 = vld [vmem:[%s1 + $0xc0] sm:$0xff]
  %v214 = vld [vmem:[%s1 + $0xc8] sm:$0xff]
  %v215 = vld [vmem:[%s1 + $0xd0] sm:$0xff]
  %v216 = vld [vmem:[%s1 + $0xd8] sm:$0xff]
  %v217 = vld [vmem:[%s1 + $0xe0] sm:$0xff]
  %v218 = vld [vmem:[%s1 + $0xe8] sm:$0xff]
  %v219 = vld [vmem:[%s1 + $0xf0] sm:$0xff]
  %v220 = vld [vmem:[%s1 + $0xf8] sm:$0xff]
  %v221 = vld [vmem:[%s1 + $0x100] sm:$0xff]
  %v222 = vld [vmem:[%s1 + $0x108] sm:$0xff]
  %v223 = vld [vmem:[%s1 + $0x110] sm:$0xff]
  %v224 = vld [vmem:[%s1 + $0x118] sm:$0xff]
  %v225 = vld [vmem:[%s1 + $0x120] sm:$0xff]
  %v226 = vld [vmem:[%s1 + $0x128] sm:$0xff]
  %v227 = vld [vmem:[%s1 + $0x130] sm:$0xff]
  %v228 = vld [vmem:[%s1 + $0x138] sm:$0xff]
  %v229 = vld [vmem:[%s1 + $0x140] sm:$0xff]
  %v230 = vld [vmem:[%s1 + $0x148] sm:$0xff]
  %v231 = vld [vmem:[%s1 + $0x150] sm:$0xff]
  %v232 = vld [vmem:[%s1 + $0x158] sm:$0xff]
  %v233 = vld [vmem:[%s1 + $0x160] sm:$0xff]
  %v234 = vld [vmem:[%s1 + $0x168] sm:$0xff]
  %v235 = vld [vmem:[%s1 + $0x170] sm:$0xff]
  %v236 = vld [vmem:[%s1 + $0x178] sm:$0xff]
  %v237 = vld [vmem:[%s1 + $0x180] sm:$0xff]
  %v238 = vld [vmem:[%s1 + $0x188] sm:$0xff]
  %v239 = vld [vmem:[%s1 + $0x190] sm:$0xff]
  %v240 = vld [vmem:[%s1 + $0x198] sm:$0xff]
  %v241 = vld [vmem:[%s1 + $0x1a0] sm:$0xff]
  %v242 = vld [vmem:[%s1 + $0x1a8] sm:$0xff]
  %v243 = vld [vmem:[%s1 + $0x1b0] sm:$0xff]
  %v244 = vld [vmem:[%s1 + $0x1b8] sm:$0xff]
  %v245 = vld [vmem:[%s1 + $0x1c0] sm:$0xff]
  %v246 = vld [vmem:[%s1 + $0x1c8] sm:$0xff]
  %v247 = vld [vmem:[%s1 + $0x1d0] sm:$0xff]
  %v248 = vld [vmem:[%s1 + $0x1d8] sm:$0xff]
  %v249 = vld [vmem:[%s1 + $0x1e0] sm:$0xff]
  %v250 = vld [vmem:[%s1 + $0x1e8] sm:$0xff]
  %v251 = vld [vmem:[%s1 + $0x1f0] sm:$0xff]
  %v252 = vld [vmem:[%s1 + $0x1f8] sm:$0xff]
  %v253 = vld [vmem:[%s1 + $0x200] sm:$0xff]
  %v254 = vld [vmem:[%s1 + $0x208] sm:$0xff]
  %v255 = vld [vmem:[%s1 + $0x210] sm:$0xff]
  %v256 = vld [vmem:[%s1 + $0x218] sm:$0xff]
  %v257 = vld [vmem:[%s1 + $0x220] sm:$0xff]
  %v258 = vld [vmem:[%s1 + $0x228] sm:$0xff]
  %v259 = vld [vmem:[%s1 + $0x230] sm:$0xff]
  %v260 = vld [vmem:[%s1 + $0x238] sm:$0xff]
  %v261 = vld [vmem:[%s1 + $0x240] sm:$0xff]
  %v262 = vld [vmem:[%s1 + $0x248] sm:$0xff]
  %v263 = vld [vmem:[%s1 + $0x250] sm:$0xff]
  %v264 = vld [vmem:[%s1 + $0x258] sm:$0xff]
  %v265 = vld [vmem:[%s1 + $0x260] sm:$0xff]
  %v266 = vld [vmem:[%s1 + $0x268] sm:$0xff]
  %v267 = vld [vmem:[%s1 + $0x270] sm:$0xff]
  %v268 = vld [vmem:[%s1 + $0x278] sm:$0xff]
  %v269 = vld [vmem:[%s1 + $0x280] sm:$0xff]
  %v270 = vld [vmem:[%s1 + $0x288] sm:$0xff]
  %v271 = vld [vmem:[%s1 + $0x290] sm:$0xff]
  %v272 = vld [vmem:[%s1 + $0x298] sm:$0xff]
  %v273 = vld [vmem:[%s1 + $0x2a0] sm:$0xff]
  %v274 = vld [vmem:[%s1 + $0x2a8] sm:$0xff]
  %v275 = vld [vmem:[%s1 + $0x2b0] sm:$0xff]
  %v276 = vld [vmem:[%s1 + $0x2b8] sm:$0xff]
  %v277 = vld [vmem:[%s1 + $0x2c0] sm:$0xff]
  %v278 = vld [vmem:[%s1 + $0x2c8] sm:$0xff]
  %v279 = vld [vmem:[%s1 + $0x2d0] sm:$0xff]
  %v280 = vld [vmem:[%s1 + $0x2d8] sm:$0xff]
  %v281 = vld [vmem:[%s1 + $0x2e0] sm:$0xff]
  %v282 = vld [vmem:[%s1 + $0x2e8] sm:$0xff]
  %v283 = vld [vmem:[%s1 + $0x2f0] sm:$0xff]
  %v284 = vld [vmem:[%s1 + $0x2f8] sm:$0xff]
  %v285 = vld [vmem:[%s1 + $0x300] sm:$0xff]
  %v286 = vld [vmem:[%s1 + $0x308] sm:$0xff]
  %v287 = vld [vmem:[%s2] sm:$0x3]
  %v289 = vperm.slane %v287, 0
  %v290 = vperm.slane %v287, 1
  %v391 = vunpack.c.l.b16 %v189
  %v392 = vunpack.c.h.b16 %v189
  %v393 = vunpack.c.l.b16 %v190
  %v394 = vunpack.c.h.b16 %v190
  %v395 = vunpack.c.l.b16 %v191
  %v396 = vunpack.c.h.b16 %v191
  %v397 = vunpack.c.l.b16 %v192
  %v398 = vunpack.c.h.b16 %v192
  %v399 = vunpack.c.l.b16 %v193
  %v400 = vunpack.c.h.b16 %v193
  %v401 = vunpack.c.l.b16 %v194
  %v402 = vunpack.c.h.b16 %v194
  %v403 = vunpack.c.l.b16 %v195
  %v404 = vunpack.c.h.b16 %v195
  %v405 = vunpack.c.l.b16 %v196
  %v406 = vunpack.c.h.b16 %v196
  %v407 = vunpack.c.l.b16 %v197
  %v408 = vunpack.c.h.b16 %v197
  %v409 = vunpack.c.l.b16 %v198
  %v410 = vunpack.c.h.b16 %v198
  %v411 = vunpack.c.l.b16 %v199
  %v412 = vunpack.c.h.b16 %v199
  %v413 = vunpack.c.l.b16 %v200
  %v414 = vunpack.c.h.b16 %v200
  %v415 = vunpack.c.l.b16 %v201
  %v416 = vunpack.c.h.b16 %v201
  %v417 = vunpack.c.l.b16 %v202
  %v418 = vunpack.c.h.b16 %v202
  %v419 = vunpack.c.l.b16 %v203
  %v420 = vunpack.c.h.b16 %v203
  %v421 = vunpack.c.l.b16 %v204
  %v422 = vunpack.c.h.b16 %v204
  %v423 = vunpack.c.l.b16 %v205
  %v424 = vunpack.c.h.b16 %v205
  %v425 = vunpack.c.l.b16 %v206
  %v426 = vunpack.c.h.b16 %v206
  %v427 = vunpack.c.l.b16 %v207
  %v428 = vunpack.c.h.b16 %v207
  %v429 = vunpack.c.l.b16 %v208
  %v430 = vunpack.c.h.b16 %v208
  %v431 = vunpack.c.l.b16 %v209
  %v432 = vunpack.c.h.b16 %v209
  %v433 = vunpack.c.l.b16 %v210
  %v434 = vunpack.c.h.b16 %v210
  %v435 = vunpack.c.l.b16 %v211
  %v436 = vunpack.c.h.b16 %v211
  %v437 = vunpack.c.l.b16 %v212
  %v438 = vunpack.c.h.b16 %v212
  %v439 = vunpack.c.l.b16 %v213
  %v440 = vunpack.c.h.b16 %v213
  %v441 = vunpack.c.l.b16 %v214
  %v442 = vunpack.c.h.b16 %v214
  %v443 = vunpack.c.l.b16 %v215
  %v444 = vunpack.c.h.b16 %v215
  %v445 = vunpack.c.l.b16 %v216
  %v446 = vunpack.c.h.b16 %v216
  %v447 = vunpack.c.l.b16 %v217
  %v448 = vunpack.c.h.b16 %v217
  %v449 = vunpack.c.l.b16 %v218
  %v450 = vunpack.c.h.b16 %v218
  %v451 = vunpack.c.l.b16 %v219
  %v452 = vunpack.c.h.b16 %v219
  %v453 = vunpack.c.l.b16 %v220
  %v454 = vunpack.c.h.b16 %v220
  %v455 = vunpack.c.l.b16 %v221
  %v456 = vunpack.c.h.b16 %v221
  %v457 = vunpack.c.l.b16 %v222
  %v458 = vunpack.c.h.b16 %v222
  %v459 = vunpack.c.l.b16 %v223
  %v460 = vunpack.c.h.b16 %v223
  %v461 = vunpack.c.l.b16 %v224
  %v462 = vunpack.c.h.b16 %v224
  %v463 = vunpack.c.l.b16 %v225
  %v464 = vunpack.c.h.b16 %v225
  %v465 = vunpack.c.l.b16 %v226
  %v466 = vunpack.c.h.b16 %v226
  %v467 = vunpack.c.l.b16 %v227
  %v468 = vunpack.c.h.b16 %v227
  %v469 = vunpack.c.l.b16 %v228
  %v470 = vunpack.c.h.b16 %v228
  %v471 = vunpack.c.l.b16 %v229
  %v472 = vunpack.c.h.b16 %v229
  %v473 = vunpack.c.l.b16 %v230
  %v474 = vunpack.c.h.b16 %v230
  %v475 = vunpack.c.l.b16 %v231
  %v476 = vunpack.c.h.b16 %v231
  %v477 = vunpack.c.l.b16 %v232
  %v478 = vunpack.c.h.b16 %v232
  %v479 = vunpack.c.l.b16 %v233
  %v480 = vunpack.c.h.b16 %v233
  %v481 = vunpack.c.l.b16 %v234
  %v482 = vunpack.c.h.b16 %v234
  %v483 = vunpack.c.l.b16 %v235
  %v484 = vunpack.c.h.b16 %v235
  %v485 = vunpack.c.l.b16 %v236
  %v486 = vunpack.c.h.b16 %v236
  %v487 = vunpack.c.l.b16 %v237
  %v488 = vunpack.c.h.b16 %v237
  %v489 = vunpack.c.l.b16 %v238
  %v490 = vunpack.c.h.b16 %v238
  %v491 = vunpack.c.l.b16 %v239
  %v492 = vunpack.c.h.b16 %v239
  %v493 = vunpack.c.l.b16 %v240
  %v494 = vunpack.c.h.b16 %v240
  %v495 = vunpack.c.l.b16 %v241
  %v496 = vunpack.c.h.b16 %v241
  %v497 = vunpack.c.l.b16 %v242
  %v498 = vunpack.c.h.b16 %v242
  %v499 = vunpack.c.l.b16 %v243
  %v500 = vunpack.c.h.b16 %v243
  %v501 = vunpack.c.l.b16 %v244
  %v502 = vunpack.c.h.b16 %v244
  %v503 = vunpack.c.l.b16 %v245
  %v504 = vunpack.c.h.b16 %v245
  %v505 = vunpack.c.l.b16 %v246
  %v506 = vunpack.c.h.b16 %v246
  %v507 = vunpack.c.l.b16 %v247
  %v508 = vunpack.c.h.b16 %v247
  %v509 = vunpack.c.l.b16 %v248
  %v510 = vunpack.c.h.b16 %v248
  %v511 = vunpack.c.l.b16 %v249
  %v512 = vunpack.c.h.b16 %v249
  %v513 = vunpack.c.l.b16 %v250
  %v514 = vunpack.c.h.b16 %v250
  %v515 = vunpack.c.l.b16 %v251
  %v516 = vunpack.c.h.b16 %v251
  %v517 = vunpack.c.l.b16 %v252
  %v518 = vunpack.c.h.b16 %v252
  %v519 = vunpack.c.l.b16 %v253
  %v520 = vunpack.c.h.b16 %v253
  %v521 = vunpack.c.l.b16 %v254
  %v522 = vunpack.c.h.b16 %v254
  %v523 = vunpack.c.l.b16 %v255
  %v524 = vunpack.c.h.b16 %v255
  %v525 = vunpack.c.l.b16 %v256
  %v526 = vunpack.c.h.b16 %v256
  %v527 = vunpack.c.l.b16 %v257
  %v528 = vunpack.c.h.b16 %v257
  %v529 = vunpack.c.l.b16 %v258
  %v530 = vunpack.c.h.b16 %v258
  %v531 = vunpack.c.l.b16 %v259
  %v532 = vunpack.c.h.b16 %v259
  %v533 = vunpack.c.l.b16 %v260
  %v534 = vunpack.c.h.b16 %v260
  %v535 = vunpack.c.l.b16 %v261
  %v536 = vunpack.c.h.b16 %v261
  %v537 = vunpack.c.l.b16 %v262
  %v538 = vunpack.c.h.b16 %v262
  %v539 = vunpack.c.l.b16 %v263
  %v540 = vunpack.c.h.b16 %v263
  %v541 = vunpack.c.l.b16 %v264
  %v542 = vunpack.c.h.b16 %v264
  %v543 = vunpack.c.l.b16 %v265
  %v544 = vunpack.c.h.b16 %v265
  %v545 = vunpack.c.l.b16 %v266
  %v546 = vunpack.c.h.b16 %v266
  %v547 = vunpack.c.l.b16 %v267
  %v548 = vunpack.c.h.b16 %v267
  %v549 = vunpack.c.l.b16 %v268
  %v550 = vunpack.c.h.b16 %v268
  %v551 = vunpack.c.l.b16 %v269
  %v552 = vunpack.c.h.b16 %v269
  %v553 = vunpack.c.l.b16 %v270
  %v554 = vunpack.c.h.b16 %v270
  %v555 = vunpack.c.l.b16 %v271
  %v556 = vunpack.c.h.b16 %v271
  %v557 = vunpack.c.l.b16 %v272
  %v558 = vunpack.c.h.b16 %v272
  %v559 = vunpack.c.l.b16 %v273
  %v560 = vunpack.c.h.b16 %v273
  %v561 = vunpack.c.l.b16 %v274
  %v562 = vunpack.c.h.b16 %v274
  %v563 = vunpack.c.l.b16 %v275
  %v564 = vunpack.c.h.b16 %v275
  %v565 = vunpack.c.l.b16 %v276
  %v566 = vunpack.c.h.b16 %v276
  %v567 = vunpack.c.l.b16 %v277
  %v568 = vunpack.c.h.b16 %v277
  %v569 = vunpack.c.l.b16 %v278
  %v570 = vunpack.c.h.b16 %v278
  %v571 = vunpack.c.l.b16 %v279
  %v572 = vunpack.c.h.b16 %v279
  %v573 = vunpack.c.l.b16 %v280
  %v574 = vunpack.c.h.b16 %v280
  %v575 = vunpack.c.l.b16 %v281
  %v576 = vunpack.c.h.b16 %v281
  %v577 = vunpack.c.l.b16 %v282
  %v578 = vunpack.c.h.b16 %v282
  %v579 = vunpack.c.l.b16 %v283
  %v580 = vunpack.c.h.b16 %v283
  %v581 = vunpack.c.l.b16 %v284
  %v582 = vunpack.c.h.b16 %v284
  %v583 = vunpack.c.l.b16 %v285
  %v584 = vunpack.c.h.b16 %v285
  %v585 = vunpack.c.l.b16 %v286
  %v586 = vunpack.c.h.b16 %v286
  %v587 = vpack.c.b16 %v393, %v391
  %v588 = vpack.c.b16 %v394, %v392
  %v589 = vpack.c.b16 %v397, %v395
  %v590 = vpack.c.b16 %v398, %v396
  %v591 = vpack.c.b16 %v401, %v399
  %v592 = vpack.c.b16 %v402, %v400
  %v593 = vpack.c.b16 %v405, %v403
  %v594 = vpack.c.b16 %v406, %v404
  %v595 = vpack.c.b16 %v409, %v407
  %v596 = vpack.c.b16 %v410, %v408
  %v597 = vpack.c.b16 %v413, %v411
  %v598 = vpack.c.b16 %v414, %v412
  %v599 = vpack.c.b16 %v417, %v415
  %v600 = vpack.c.b16 %v418, %v416
  %v601 = vpack.c.b16 %v421, %v419
  %v602 = vpack.c.b16 %v422, %v420
  %v603 = vpack.c.b16 %v425, %v423
  %v604 = vpack.c.b16 %v426, %v424
  %v605 = vpack.c.b16 %v429, %v427
  %v606 = vpack.c.b16 %v430, %v428
  %v607 = vpack.c.b16 %v433, %v431
  %v608 = vpack.c.b16 %v434, %v432
  %v609 = vpack.c.b16 %v437, %v435
  %v610 = vpack.c.b16 %v438, %v436
  %v611 = vpack.c.b16 %v441, %v439
  %v612 = vpack.c.b16 %v442, %v440
  %v613 = vpack.c.b16 %v445, %v443
  %v614 = vpack.c.b16 %v446, %v444
  %v615 = vpack.c.b16 %v449, %v447
  %v616 = vpack.c.b16 %v450, %v448
  %v617 = vpack.c.b16 %v453, %v451
  %v618 = vpack.c.b16 %v454, %v452
  %v619 = vpack.c.b16 %v457, %v455
  %v620 = vpack.c.b16 %v458, %v456
  %v621 = vpack.c.b16 %v461, %v459
  %v622 = vpack.c.b16 %v462, %v460
  %v623 = vpack.c.b16 %v465, %v463
  %v624 = vpack.c.b16 %v466, %v464
  %v625 = vpack.c.b16 %v469, %v467
  %v626 = vpack.c.b16 %v470, %v468
  %v627 = vpack.c.b16 %v473, %v471
  %v628 = vpack.c.b16 %v474, %v472
  %v629 = vpack.c.b16 %v477, %v475
  %v630 = vpack.c.b16 %v478, %v476
  %v631 = vpack.c.b16 %v481, %v479
  %v632 = vpack.c.b16 %v482, %v480
  %v633 = vpack.c.b16 %v485, %v483
  %v634 = vpack.c.b16 %v486, %v484
  %v635 = vpack.c.b16 %v489, %v487
  %v636 = vpack.c.b16 %v490, %v488
  %v637 = vpack.c.b16 %v493, %v491
  %v638 = vpack.c.b16 %v494, %v492
  %v639 = vpack.c.b16 %v497, %v495
  %v640 = vpack.c.b16 %v498, %v496
  %v641 = vpack.c.b16 %v501, %v499
  %v642 = vpack.c.b16 %v502, %v500
  %v643 = vpack.c.b16 %v505, %v503
  %v644 = vpack.c.b16 %v506, %v504
  %v645 = vpack.c.b16 %v509, %v507
  %v646 = vpack.c.b16 %v510, %v508
  %v647 = vpack.c.b16 %v513, %v511
  %v648 = vpack.c.b16 %v514, %v512
  %v649 = vpack.c.b16 %v517, %v515
  %v650 = vpack.c.b16 %v518, %v516
  %v651 = vpack.c.b16 %v521, %v519
  %v652 = vpack.c.b16 %v522, %v520
  %v653 = vpack.c.b16 %v525, %v523
  %v654 = vpack.c.b16 %v526, %v524
  %v655 = vpack.c.b16 %v529, %v527
  %v656 = vpack.c.b16 %v530, %v528
  %v657 = vpack.c.b16 %v533, %v531
  %v658 = vpack.c.b16 %v534, %v532
  %v659 = vpack.c.b16 %v537, %v535
  %v660 = vpack.c.b16 %v538, %v536
  %v661 = vpack.c.b16 %v541, %v539
  %v662 = vpack.c.b16 %v542, %v540
  %v663 = vpack.c.b16 %v545, %v543
  %v664 = vpack.c.b16 %v546, %v544
  %v665 = vpack.c.b16 %v549, %v547
  %v666 = vpack.c.b16 %v550, %v548
  %v667 = vpack.c.b16 %v553, %v551
  %v668 = vpack.c.b16 %v554, %v552
  %v669 = vpack.c.b16 %v557, %v555
  %v670 = vpack.c.b16 %v558, %v556
  %v671 = vpack.c.b16 %v561, %v559
  %v672 = vpack.c.b16 %v562, %v560
  %v673 = vpack.c.b16 %v565, %v563
  %v674 = vpack.c.b16 %v566, %v564
  %v675 = vpack.c.b16 %v569, %v567
  %v676 = vpack.c.b16 %v570, %v568
  %v677 = vpack.c.b16 %v573, %v571
  %v678 = vpack.c.b16 %v574, %v572
  %v679 = vpack.c.b16 %v577, %v575
  %v680 = vpack.c.b16 %v578, %v576
  %v681 = vpack.c.b16 %v581, %v579
  %v682 = vpack.c.b16 %v582, %v580
  %v683 = vpack.c.b16 %v585, %v583
  %v684 = vpack.c.b16 %v586, %v584
  %vm783 = vcmask 130048
  %v785 = vsel %vm783, %v139, 0
  %v788 = vsel %vm783, %v146, 0
  %v791 = vsel %vm783, %v153, 0
  %v794 = vsel %vm783, %v160, 0
  %v797 = vsel %vm783, %v167, 0
  %v800 = vsel %vm783, %v174, 0
  %v803 = vsel %vm783, %v181, 0
  %v806 = vsel %vm783, %v188, 0
  %808 = vmatpush.bf16.msra.mxu0 %v601
  %809 = vmatpush.bf16.msra.mxu0 %v599
  %810 = vmatpush.bf16.msra.mxu0 %v597
  %811 = vmatpush.bf16.msra.mxu0 %v595
  %812 = vmatpush.bf16.msra.mxu0 %v593
  %813 = vmatpush.bf16.msra.mxu0 %v591
  %814 = vmatpush.bf16.msra.mxu0 %v589
  %815 = vmatpush.bf16.msra.mxu0 %v587
  %816 = vmatmul.bf16.gmra.mxu0 %v133
  %v817 = vpop.f32.mrf.mxu0
  %v818 = vadd.f32 %v289, %v817
  %v819 = vpop.f32.mrf.mxu0
  %v820 = vadd.f32 %v289, %v819
  %821 = vmatmul.bf16.gmra.mxu0 %v140
  %v822 = vpop.f32.mrf.mxu0
  %v823 = vadd.f32 %v289, %v822
  %v824 = vpop.f32.mrf.mxu0
  %v825 = vadd.f32 %v289, %v824
  %826 = vmatmul.bf16.gmra.mxu0 %v147
  %v827 = vpop.f32.mrf.mxu0
  %v828 = vadd.f32 %v289, %v827
  %v829 = vpop.f32.mrf.mxu0
  %v830 = vadd.f32 %v289, %v829
  %831 = vmatmul.bf16.gmra.mxu0 %v154
  %v832 = vpop.f32.mrf.mxu0
  %v833 = vadd.f32 %v289, %v832
  %v834 = vpop.f32.mrf.mxu0
  %v835 = vadd.f32 %v289, %v834
  %836 = vmatmul.bf16.gmra.mxu0 %v161
  %v837 = vpop.f32.mrf.mxu0
  %v838 = vadd.f32 %v289, %v837
  %v839 = vpop.f32.mrf.mxu0
  %v840 = vadd.f32 %v289, %v839
  %841 = vmatmul.bf16.gmra.mxu0 %v168
  %v842 = vpop.f32.mrf.mxu0
  %v843 = vadd.f32 %v289, %v842
  %v844 = vpop.f32.mrf.mxu0
  %v845 = vadd.f32 %v289, %v844
  %846 = vmatmul.bf16.gmra.mxu0 %v175
  %v847 = vpop.f32.mrf.mxu0
  %v848 = vadd.f32 %v289, %v847
  %v849 = vpop.f32.mrf.mxu0
  %v850 = vadd.f32 %v289, %v849
  %851 = vmatmul.bf16.gmra.mxu0 %v182
  %v852 = vpop.f32.mrf.mxu0
  %v853 = vadd.f32 %v289, %v852
  %v854 = vpop.f32.mrf.mxu0
  %v855 = vadd.f32 %v289, %v854
  %856 = vdwg.mxu0
  %857 = vmatpush.bf16.msra.mxu0 %v617
  %858 = vmatpush.bf16.msra.mxu0 %v615
  %859 = vmatpush.bf16.msra.mxu0 %v613
  %860 = vmatpush.bf16.msra.mxu0 %v611
  %861 = vmatpush.bf16.msra.mxu0 %v609
  %862 = vmatpush.bf16.msra.mxu0 %v607
  %863 = vmatpush.bf16.msra.mxu0 %v605
  %864 = vmatpush.bf16.msra.mxu0 %v603
  %865 = vmatmul.bf16.gmra.mxu0 %v134
  %v866 = vpop.f32.mrf.mxu0
  %v867 = vadd.f32 %v818, %v866
  %v868 = vpop.f32.mrf.mxu0
  %v869 = vadd.f32 %v820, %v868
  %870 = vmatmul.bf16.gmra.mxu0 %v141
  %v871 = vpop.f32.mrf.mxu0
  %v872 = vadd.f32 %v823, %v871
  %v873 = vpop.f32.mrf.mxu0
  %v874 = vadd.f32 %v825, %v873
  %875 = vmatmul.bf16.gmra.mxu0 %v148
  %v876 = vpop.f32.mrf.mxu0
  %v877 = vadd.f32 %v828, %v876
  %v878 = vpop.f32.mrf.mxu0
  %v879 = vadd.f32 %v830, %v878
  %880 = vmatmul.bf16.gmra.mxu0 %v155
  %v881 = vpop.f32.mrf.mxu0
  %v882 = vadd.f32 %v833, %v881
  %v883 = vpop.f32.mrf.mxu0
  %v884 = vadd.f32 %v835, %v883
  %885 = vmatmul.bf16.gmra.mxu0 %v162
  %v886 = vpop.f32.mrf.mxu0
  %v887 = vadd.f32 %v838, %v886
  %v888 = vpop.f32.mrf.mxu0
  %v889 = vadd.f32 %v840, %v888
  %890 = vmatmul.bf16.gmra.mxu0 %v169
  %v891 = vpop.f32.mrf.mxu0
  %v892 = vadd.f32 %v843, %v891
  %v893 = vpop.f32.mrf.mxu0
  %v894 = vadd.f32 %v845, %v893
  %895 = vmatmul.bf16.gmra.mxu0 %v176
  %v896 = vpop.f32.mrf.mxu0
  %v897 = vadd.f32 %v848, %v896
  %v898 = vpop.f32.mrf.mxu0
  %v899 = vadd.f32 %v850, %v898
  %900 = vmatmul.bf16.gmra.mxu0 %v183
  %v901 = vpop.f32.mrf.mxu0
  %v902 = vadd.f32 %v853, %v901
  %v903 = vpop.f32.mrf.mxu0
  %v904 = vadd.f32 %v855, %v903
  %905 = vdwg.mxu0
  %906 = vmatpush.bf16.msra.mxu0 %v633
  %907 = vmatpush.bf16.msra.mxu0 %v631
  %908 = vmatpush.bf16.msra.mxu0 %v629
  %909 = vmatpush.bf16.msra.mxu0 %v627
  %910 = vmatpush.bf16.msra.mxu0 %v625
  %911 = vmatpush.bf16.msra.mxu0 %v623
  %912 = vmatpush.bf16.msra.mxu0 %v621
  %913 = vmatpush.bf16.msra.mxu0 %v619
  %914 = vmatmul.bf16.gmra.mxu0 %v135
  %v915 = vpop.f32.mrf.mxu0
  %v916 = vadd.f32 %v867, %v915
  %v917 = vpop.f32.mrf.mxu0
  %v918 = vadd.f32 %v869, %v917
  %919 = vmatmul.bf16.gmra.mxu0 %v142
  %v920 = vpop.f32.mrf.mxu0
  %v921 = vadd.f32 %v872, %v920
  %v922 = vpop.f32.mrf.mxu0
  %v923 = vadd.f32 %v874, %v922
  %924 = vmatmul.bf16.gmra.mxu0 %v149
  %v925 = vpop.f32.mrf.mxu0
  %v926 = vadd.f32 %v877, %v925
  %v927 = vpop.f32.mrf.mxu0
  %v928 = vadd.f32 %v879, %v927
  %929 = vmatmul.bf16.gmra.mxu0 %v156
  %v930 = vpop.f32.mrf.mxu0
  %v931 = vadd.f32 %v882, %v930
  %v932 = vpop.f32.mrf.mxu0
  %v933 = vadd.f32 %v884, %v932
  %934 = vmatmul.bf16.gmra.mxu0 %v163
  %v935 = vpop.f32.mrf.mxu0
  %v936 = vadd.f32 %v887, %v935
  %v937 = vpop.f32.mrf.mxu0
  %v938 = vadd.f32 %v889, %v937
  %939 = vmatmul.bf16.gmra.mxu0 %v170
  %v940 = vpop.f32.mrf.mxu0
  %v941 = vadd.f32 %v892, %v940
  %v942 = vpop.f32.mrf.mxu0
  %v943 = vadd.f32 %v894, %v942
  %944 = vmatmul.bf16.gmra.mxu0 %v177
  %v945 = vpop.f32.mrf.mxu0
  %v946 = vadd.f32 %v897, %v945
  %v947 = vpop.f32.mrf.mxu0
  %v948 = vadd.f32 %v899, %v947
  %949 = vmatmul.bf16.gmra.mxu0 %v184
  %v950 = vpop.f32.mrf.mxu0
  %v951 = vadd.f32 %v902, %v950
  %v952 = vpop.f32.mrf.mxu0
  %v953 = vadd.f32 %v904, %v952
  %954 = vdwg.mxu0
  %955 = vmatpush.bf16.msra.mxu0 %v649
  %956 = vmatpush.bf16.msra.mxu0 %v647
  %957 = vmatpush.bf16.msra.mxu0 %v645
  %958 = vmatpush.bf16.msra.mxu0 %v643
  %959 = vmatpush.bf16.msra.mxu0 %v641
  %960 = vmatpush.bf16.msra.mxu0 %v639
  %961 = vmatpush.bf16.msra.mxu0 %v637
  %962 = vmatpush.bf16.msra.mxu0 %v635
  %963 = vmatmul.bf16.gmra.mxu0 %v136
  %v964 = vpop.f32.mrf.mxu0
  %v965 = vadd.f32 %v916, %v964
  %v966 = vpop.f32.mrf.mxu0
  %v967 = vadd.f32 %v918, %v966
  %968 = vmatmul.bf16.gmra.mxu0 %v143
  %v969 = vpop.f32.mrf.mxu0
  %v970 = vadd.f32 %v921, %v969
  %v971 = vpop.f32.mrf.mxu0
  %v972 = vadd.f32 %v923, %v971
  %973 = vmatmul.bf16.gmra.mxu0 %v150
  %v974 = vpop.f32.mrf.mxu0
  %v975 = vadd.f32 %v926, %v974
  %v976 = vpop.f32.mrf.mxu0
  %v977 = vadd.f32 %v928, %v976
  %978 = vmatmul.bf16.gmra.mxu0 %v157
  %v979 = vpop.f32.mrf.mxu0
  %v980 = vadd.f32 %v931, %v979
  %v981 = vpop.f32.mrf.mxu0
  %v982 = vadd.f32 %v933, %v981
  %983 = vmatmul.bf16.gmra.mxu0 %v164
  %v984 = vpop.f32.mrf.mxu0
  %v985 = vadd.f32 %v936, %v984
  %v986 = vpop.f32.mrf.mxu0
  %v987 = vadd.f32 %v938, %v986
  %988 = vmatmul.bf16.gmra.mxu0 %v171
  %v989 = vpop.f32.mrf.mxu0
  %v990 = vadd.f32 %v941, %v989
  %v991 = vpop.f32.mrf.mxu0
  %v992 = vadd.f32 %v943, %v991
  %993 = vmatmul.bf16.gmra.mxu0 %v178
  %v994 = vpop.f32.mrf.mxu0
  %v995 = vadd.f32 %v946, %v994
  %v996 = vpop.f32.mrf.mxu0
  %v997 = vadd.f32 %v948, %v996
  %998 = vmatmul.bf16.gmra.mxu0 %v185
  %v999 = vpop.f32.mrf.mxu0
  %v1000 = vadd.f32 %v951, %v999
  %v1001 = vpop.f32.mrf.mxu0
  %v1002 = vadd.f32 %v953, %v1001
  %1003 = vdwg.mxu0
  %1004 = vmatpush.bf16.msra.mxu0 %v665
  %1005 = vmatpush.bf16.msra.mxu0 %v663
  %1006 = vmatpush.bf16.msra.mxu0 %v661
  %1007 = vmatpush.bf16.msra.mxu0 %v659
  %1008 = vmatpush.bf16.msra.mxu0 %v657
  %1009 = vmatpush.bf16.msra.mxu0 %v655
  %1010 = vmatpush.bf16.msra.mxu0 %v653
  %1011 = vmatpush.bf16.msra.mxu0 %v651
  %1012 = vmatmul.bf16.gmra.mxu0 %v137
  %v1013 = vpop.f32.mrf.mxu0
  %v1014 = vadd.f32 %v965, %v1013
  %v1015 = vpop.f32.mrf.mxu0
  %v1016 = vadd.f32 %v967, %v1015
  %1017 = vmatmul.bf16.gmra.mxu0 %v144
  %v1018 = vpop.f32.mrf.mxu0
  %v1019 = vadd.f32 %v970, %v1018
  %v1020 = vpop.f32.mrf.mxu0
  %v1021 = vadd.f32 %v972, %v1020
  %1022 = vmatmul.bf16.gmra.mxu0 %v151
  %v1023 = vpop.f32.mrf.mxu0
  %v1024 = vadd.f32 %v975, %v1023
  %v1025 = vpop.f32.mrf.mxu0
  %v1026 = vadd.f32 %v977, %v1025
  %1027 = vmatmul.bf16.gmra.mxu0 %v158
  %v1028 = vpop.f32.mrf.mxu0
  %v1029 = vadd.f32 %v980, %v1028
  %v1030 = vpop.f32.mrf.mxu0
  %v1031 = vadd.f32 %v982, %v1030
  %1032 = vmatmul.bf16.gmra.mxu0 %v165
  %v1033 = vpop.f32.mrf.mxu0
  %v1034 = vadd.f32 %v985, %v1033
  %v1035 = vpop.f32.mrf.mxu0
  %v1036 = vadd.f32 %v987, %v1035
  %1037 = vmatmul.bf16.gmra.mxu0 %v172
  %v1038 = vpop.f32.mrf.mxu0
  %v1039 = vadd.f32 %v990, %v1038
  %v1040 = vpop.f32.mrf.mxu0
  %v1041 = vadd.f32 %v992, %v1040
  %1042 = vmatmul.bf16.gmra.mxu0 %v179
  %v1043 = vpop.f32.mrf.mxu0
  %v1044 = vadd.f32 %v995, %v1043
  %v1045 = vpop.f32.mrf.mxu0
  %v1046 = vadd.f32 %v997, %v1045
  %1047 = vmatmul.bf16.gmra.mxu0 %v186
  %v1048 = vpop.f32.mrf.mxu0
  %v1049 = vadd.f32 %v1000, %v1048
  %v1050 = vpop.f32.mrf.mxu0
  %v1051 = vadd.f32 %v1002, %v1050
  %1052 = vdwg.mxu0
  %1053 = vmatpush.bf16.msra.mxu0 %v681
  %1054 = vmatpush.bf16.msra.mxu0 %v679
  %1055 = vmatpush.bf16.msra.mxu0 %v677
  %1056 = vmatpush.bf16.msra.mxu0 %v675
  %1057 = vmatpush.bf16.msra.mxu0 %v673
  %1058 = vmatpush.bf16.msra.mxu0 %v671
  %1059 = vmatpush.bf16.msra.mxu0 %v669
  %1060 = vmatpush.bf16.msra.mxu0 %v667
  %1061 = vmatmul.bf16.gmra.mxu0 %v138
  %v1062 = vpop.f32.mrf.mxu0
  %v1063 = vadd.f32 %v1014, %v1062
  %v1064 = vpop.f32.mrf.mxu0
  %v1065 = vadd.f32 %v1016, %v1064
  %1066 = vmatmul.bf16.gmra.mxu0 %v145
  %v1067 = vpop.f32.mrf.mxu0
  %v1068 = vadd.f32 %v1019, %v1067
  %v1069 = vpop.f32.mrf.mxu0
  %v1070 = vadd.f32 %v1021, %v1069
  %1071 = vmatmul.bf16.gmra.mxu0 %v152
  %v1072 = vpop.f32.mrf.mxu0
  %v1073 = vadd.f32 %v1024, %v1072
  %v1074 = vpop.f32.mrf.mxu0
  %v1075 = vadd.f32 %v1026, %v1074
  %1076 = vmatmul.bf16.gmra.mxu0 %v159
  %v1077 = vpop.f32.mrf.mxu0
  %v1078 = vadd.f32 %v1029, %v1077
  %v1079 = vpop.f32.mrf.mxu0
  %v1080 = vadd.f32 %v1031, %v1079
  %1081 = vmatmul.bf16.gmra.mxu0 %v166
  %v1082 = vpop.f32.mrf.mxu0
  %v1083 = vadd.f32 %v1034, %v1082
  %v1084 = vpop.f32.mrf.mxu0
  %v1085 = vadd.f32 %v1036, %v1084
  %1086 = vmatmul.bf16.gmra.mxu0 %v173
  %v1087 = vpop.f32.mrf.mxu0
  %v1088 = vadd.f32 %v1039, %v1087
  %v1089 = vpop.f32.mrf.mxu0
  %v1090 = vadd.f32 %v1041, %v1089
  %1091 = vmatmul.bf16.gmra.mxu0 %v180
  %v1092 = vpop.f32.mrf.mxu0
  %v1093 = vadd.f32 %v1044, %v1092
  %v1094 = vpop.f32.mrf.mxu0
  %v1095 = vadd.f32 %v1046, %v1094
  %1096 = vmatmul.bf16.gmra.mxu0 %v187
  %v1097 = vpop.f32.mrf.mxu0
  %v1098 = vadd.f32 %v1049, %v1097
  %v1099 = vpop.f32.mrf.mxu0
  %v1100 = vadd.f32 %v1051, %v1099
  %1101 = vdwg.mxu0
  %1102 = vmatpush.bf16.msra.mxu0 0
  %1103 = vmatpush.bf16.msra.mxu0 0
  %1104 = vmatpush.bf16.msra.mxu0 0
  %1105 = vmatpush.bf16.msra.mxu0 0
  %1106 = vmatpush.bf16.msra.mxu0 0
  %1107 = vmatpush.bf16.msra.mxu0 0
  %1108 = vmatpush.bf16.msra.mxu0 0
  %1109 = vmatpush.bf16.msra.mxu0 %v683
  %1110 = vmatmul.bf16.gmra.mxu0 %v785
  %v1111 = vpop.f32.mrf.mxu0
  %v1112 = vadd.f32 %v1063, %v1111
  %v1113 = vpop.f32.mrf.mxu0
  %v1114 = vadd.f32 %v1065, %v1113
  %1115 = vmatmul.bf16.gmra.mxu0 %v788
  %v1116 = vpop.f32.mrf.mxu0
  %v1117 = vadd.f32 %v1068, %v1116
  %v1118 = vpop.f32.mrf.mxu0
  %v1119 = vadd.f32 %v1070, %v1118
  %1120 = vmatmul.bf16.gmra.mxu0 %v791
  %v1121 = vpop.f32.mrf.mxu0
  %v1122 = vadd.f32 %v1073, %v1121
  %v1123 = vpop.f32.mrf.mxu0
  %v1124 = vadd.f32 %v1075, %v1123
  %1125 = vmatmul.bf16.gmra.mxu0 %v794
  %v1126 = vpop.f32.mrf.mxu0
  %v1127 = vadd.f32 %v1078, %v1126
  %v1128 = vpop.f32.mrf.mxu0
  %v1129 = vadd.f32 %v1080, %v1128
  %1130 = vmatmul.bf16.gmra.mxu0 %v797
  %v1131 = vpop.f32.mrf.mxu0
  %v1132 = vadd.f32 %v1083, %v1131
  %v1133 = vpop.f32.mrf.mxu0
  %v1134 = vadd.f32 %v1085, %v1133
  %1135 = vmatmul.bf16.gmra.mxu0 %v800
  %v1136 = vpop.f32.mrf.mxu0
  %v1137 = vadd.f32 %v1088, %v1136
  %v1138 = vpop.f32.mrf.mxu0
  %v1139 = vadd.f32 %v1090, %v1138
  %1140 = vmatmul.bf16.gmra.mxu0 %v803
  %v1141 = vpop.f32.mrf.mxu0
  %v1142 = vadd.f32 %v1093, %v1141
  %v1143 = vpop.f32.mrf.mxu0
  %v1144 = vadd.f32 %v1095, %v1143
  %1145 = vmatmul.bf16.gmra.mxu0 %v806
  %v1146 = vpop.f32.mrf.mxu0
  %v1147 = vadd.f32 %v1098, %v1146
  %v1148 = vpop.f32.mrf.mxu0
  %v1149 = vadd.f32 %v1100, %v1148
  %1150 = vdwg.mxu0
  %1151 = vmatpush.bf16.msra.mxu0 %v602
  %1152 = vmatpush.bf16.msra.mxu0 %v600
  %1153 = vmatpush.bf16.msra.mxu0 %v598
  %1154 = vmatpush.bf16.msra.mxu0 %v596
  %1155 = vmatpush.bf16.msra.mxu0 %v594
  %1156 = vmatpush.bf16.msra.mxu0 %v592
  %1157 = vmatpush.bf16.msra.mxu0 %v590
  %1158 = vmatpush.bf16.msra.mxu0 %v588
  %1159 = vmatmul.bf16.gmra.mxu0 %v133
  %v1160 = vpop.f32.mrf.mxu0
  %v1161 = vadd.f32 %v290, %v1160
  %v1162 = vpop.f32.mrf.mxu0
  %v1163 = vadd.f32 %v290, %v1162
  %1164 = vmatmul.bf16.gmra.mxu0 %v140
  %v1165 = vpop.f32.mrf.mxu0
  %v1166 = vadd.f32 %v290, %v1165
  %v1167 = vpop.f32.mrf.mxu0
  %v1168 = vadd.f32 %v290, %v1167
  %1169 = vmatmul.bf16.gmra.mxu0 %v147
  %v1170 = vpop.f32.mrf.mxu0
  %v1171 = vadd.f32 %v290, %v1170
  %v1172 = vpop.f32.mrf.mxu0
  %v1173 = vadd.f32 %v290, %v1172
  %1174 = vmatmul.bf16.gmra.mxu0 %v154
  %v1175 = vpop.f32.mrf.mxu0
  %v1176 = vadd.f32 %v290, %v1175
  %v1177 = vpop.f32.mrf.mxu0
  %v1178 = vadd.f32 %v290, %v1177
  %1179 = vmatmul.bf16.gmra.mxu0 %v161
  %v1180 = vpop.f32.mrf.mxu0
  %v1181 = vadd.f32 %v290, %v1180
  %v1182 = vpop.f32.mrf.mxu0
  %v1183 = vadd.f32 %v290, %v1182
  %1184 = vmatmul.bf16.gmra.mxu0 %v168
  %v1185 = vpop.f32.mrf.mxu0
  %v1186 = vadd.f32 %v290, %v1185
  %v1187 = vpop.f32.mrf.mxu0
  %v1188 = vadd.f32 %v290, %v1187
  %1189 = vmatmul.bf16.gmra.mxu0 %v175
  %v1190 = vpop.f32.mrf.mxu0
  %v1191 = vadd.f32 %v290, %v1190
  %v1192 = vpop.f32.mrf.mxu0
  %v1193 = vadd.f32 %v290, %v1192
  %1194 = vmatmul.bf16.gmra.mxu0 %v182
  %v1195 = vpop.f32.mrf.mxu0
  %v1196 = vadd.f32 %v290, %v1195
  %v1197 = vpop.f32.mrf.mxu0
  %v1198 = vadd.f32 %v290, %v1197
  %1199 = vdwg.mxu0
  %1200 = vmatpush.bf16.msra.mxu0 %v618
  %1201 = vmatpush.bf16.msra.mxu0 %v616
  %1202 = vmatpush.bf16.msra.mxu0 %v614
  %1203 = vmatpush.bf16.msra.mxu0 %v612
  %1204 = vmatpush.bf16.msra.mxu0 %v610
  %1205 = vmatpush.bf16.msra.mxu0 %v608
  %1206 = vmatpush.bf16.msra.mxu0 %v606
  %1207 = vmatpush.bf16.msra.mxu0 %v604
  %1208 = vmatmul.bf16.gmra.mxu0 %v134
  %v1209 = vpop.f32.mrf.mxu0
  %v1210 = vadd.f32 %v1161, %v1209
  %v1211 = vpop.f32.mrf.mxu0
  %v1212 = vadd.f32 %v1163, %v1211
  %1213 = vmatmul.bf16.gmra.mxu0 %v141
  %v1214 = vpop.f32.mrf.mxu0
  %v1215 = vadd.f32 %v1166, %v1214
  %v1216 = vpop.f32.mrf.mxu0
  %v1217 = vadd.f32 %v1168, %v1216
  %1218 = vmatmul.bf16.gmra.mxu0 %v148
  %v1219 = vpop.f32.mrf.mxu0
  %v1220 = vadd.f32 %v1171, %v1219
  %v1221 = vpop.f32.mrf.mxu0
  %v1222 = vadd.f32 %v1173, %v1221
  %1223 = vmatmul.bf16.gmra.mxu0 %v155
  %v1224 = vpop.f32.mrf.mxu0
  %v1225 = vadd.f32 %v1176, %v1224
  %v1226 = vpop.f32.mrf.mxu0
  %v1227 = vadd.f32 %v1178, %v1226
  %1228 = vmatmul.bf16.gmra.mxu0 %v162
  %v1229 = vpop.f32.mrf.mxu0
  %v1230 = vadd.f32 %v1181, %v1229
  %v1231 = vpop.f32.mrf.mxu0
  %v1232 = vadd.f32 %v1183, %v1231
  %1233 = vmatmul.bf16.gmra.mxu0 %v169
  %v1234 = vpop.f32.mrf.mxu0
  %v1235 = vadd.f32 %v1186, %v1234
  %v1236 = vpop.f32.mrf.mxu0
  %v1237 = vadd.f32 %v1188, %v1236
  %1238 = vmatmul.bf16.gmra.mxu0 %v176
  %v1239 = vpop.f32.mrf.mxu0
  %v1240 = vadd.f32 %v1191, %v1239
  %v1241 = vpop.f32.mrf.mxu0
  %v1242 = vadd.f32 %v1193, %v1241
  %1243 = vmatmul.bf16.gmra.mxu0 %v183
  %v1244 = vpop.f32.mrf.mxu0
  %v1245 = vadd.f32 %v1196, %v1244
  %v1246 = vpop.f32.mrf.mxu0
  %v1247 = vadd.f32 %v1198, %v1246
  %1248 = vdwg.mxu0
  %1249 = vmatpush.bf16.msra.mxu0 %v634
  %1250 = vmatpush.bf16.msra.mxu0 %v632
  %1251 = vmatpush.bf16.msra.mxu0 %v630
  %1252 = vmatpush.bf16.msra.mxu0 %v628
  %1253 = vmatpush.bf16.msra.mxu0 %v626
  %1254 = vmatpush.bf16.msra.mxu0 %v624
  %1255 = vmatpush.bf16.msra.mxu0 %v622
  %1256 = vmatpush.bf16.msra.mxu0 %v620
  %1257 = vmatmul.bf16.gmra.mxu0 %v135
  %v1258 = vpop.f32.mrf.mxu0
  %v1259 = vadd.f32 %v1210, %v1258
  %v1260 = vpop.f32.mrf.mxu0
  %v1261 = vadd.f32 %v1212, %v1260
  %1262 = vmatmul.bf16.gmra.mxu0 %v142
  %v1263 = vpop.f32.mrf.mxu0
  %v1264 = vadd.f32 %v1215, %v1263
  %v1265 = vpop.f32.mrf.mxu0
  %v1266 = vadd.f32 %v1217, %v1265
  %1267 = vmatmul.bf16.gmra.mxu0 %v149
  %v1268 = vpop.f32.mrf.mxu0
  %v1269 = vadd.f32 %v1220, %v1268
  %v1270 = vpop.f32.mrf.mxu0
  %v1271 = vadd.f32 %v1222, %v1270
  %1272 = vmatmul.bf16.gmra.mxu0 %v156
  %v1273 = vpop.f32.mrf.mxu0
  %v1274 = vadd.f32 %v1225, %v1273
  %v1275 = vpop.f32.mrf.mxu0
  %v1276 = vadd.f32 %v1227, %v1275
  %1277 = vmatmul.bf16.gmra.mxu0 %v163
  %v1278 = vpop.f32.mrf.mxu0
  %v1279 = vadd.f32 %v1230, %v1278
  %v1280 = vpop.f32.mrf.mxu0
  %v1281 = vadd.f32 %v1232, %v1280
  %1282 = vmatmul.bf16.gmra.mxu0 %v170
  %v1283 = vpop.f32.mrf.mxu0
  %v1284 = vadd.f32 %v1235, %v1283
  %v1285 = vpop.f32.mrf.mxu0
  %v1286 = vadd.f32 %v1237, %v1285
  %1287 = vmatmul.bf16.gmra.mxu0 %v177
  %v1288 = vpop.f32.mrf.mxu0
  %v1289 = vadd.f32 %v1240, %v1288
  %v1290 = vpop.f32.mrf.mxu0
  %v1291 = vadd.f32 %v1242, %v1290
  %1292 = vmatmul.bf16.gmra.mxu0 %v184
  %v1293 = vpop.f32.mrf.mxu0
  %v1294 = vadd.f32 %v1245, %v1293
  %v1295 = vpop.f32.mrf.mxu0
  %v1296 = vadd.f32 %v1247, %v1295
  %1297 = vdwg.mxu0
  %1298 = vmatpush.bf16.msra.mxu0 %v650
  %1299 = vmatpush.bf16.msra.mxu0 %v648
  %1300 = vmatpush.bf16.msra.mxu0 %v646
  %1301 = vmatpush.bf16.msra.mxu0 %v644
  %1302 = vmatpush.bf16.msra.mxu0 %v642
  %1303 = vmatpush.bf16.msra.mxu0 %v640
  %1304 = vmatpush.bf16.msra.mxu0 %v638
  %1305 = vmatpush.bf16.msra.mxu0 %v636
  %1306 = vmatmul.bf16.gmra.mxu0 %v136
  %v1307 = vpop.f32.mrf.mxu0
  %v1308 = vadd.f32 %v1259, %v1307
  %v1309 = vpop.f32.mrf.mxu0
  %v1310 = vadd.f32 %v1261, %v1309
  %1311 = vmatmul.bf16.gmra.mxu0 %v143
  %v1312 = vpop.f32.mrf.mxu0
  %v1313 = vadd.f32 %v1264, %v1312
  %v1314 = vpop.f32.mrf.mxu0
  %v1315 = vadd.f32 %v1266, %v1314
  %1316 = vmatmul.bf16.gmra.mxu0 %v150
  %v1317 = vpop.f32.mrf.mxu0
  %v1318 = vadd.f32 %v1269, %v1317
  %v1319 = vpop.f32.mrf.mxu0
  %v1320 = vadd.f32 %v1271, %v1319
  %1321 = vmatmul.bf16.gmra.mxu0 %v157
  %v1322 = vpop.f32.mrf.mxu0
  %v1323 = vadd.f32 %v1274, %v1322
  %v1324 = vpop.f32.mrf.mxu0
  %v1325 = vadd.f32 %v1276, %v1324
  %1326 = vmatmul.bf16.gmra.mxu0 %v164
  %v1327 = vpop.f32.mrf.mxu0
  %v1328 = vadd.f32 %v1279, %v1327
  %v1329 = vpop.f32.mrf.mxu0
  %v1330 = vadd.f32 %v1281, %v1329
  %1331 = vmatmul.bf16.gmra.mxu0 %v171
  %v1332 = vpop.f32.mrf.mxu0
  %v1333 = vadd.f32 %v1284, %v1332
  %v1334 = vpop.f32.mrf.mxu0
  %v1335 = vadd.f32 %v1286, %v1334
  %1336 = vmatmul.bf16.gmra.mxu0 %v178
  %v1337 = vpop.f32.mrf.mxu0
  %v1338 = vadd.f32 %v1289, %v1337
  %v1339 = vpop.f32.mrf.mxu0
  %v1340 = vadd.f32 %v1291, %v1339
  %1341 = vmatmul.bf16.gmra.mxu0 %v185
  %v1342 = vpop.f32.mrf.mxu0
  %v1343 = vadd.f32 %v1294, %v1342
  %v1344 = vpop.f32.mrf.mxu0
  %v1345 = vadd.f32 %v1296, %v1344
  %1346 = vdwg.mxu0
  %1347 = vmatpush.bf16.msra.mxu0 %v666
  %1348 = vmatpush.bf16.msra.mxu0 %v664
  %1349 = vmatpush.bf16.msra.mxu0 %v662
  %1350 = vmatpush.bf16.msra.mxu0 %v660
  %1351 = vmatpush.bf16.msra.mxu0 %v658
  %1352 = vmatpush.bf16.msra.mxu0 %v656
  %1353 = vmatpush.bf16.msra.mxu0 %v654
  %1354 = vmatpush.bf16.msra.mxu0 %v652
  %1355 = vmatmul.bf16.gmra.mxu0 %v137
  %v1356 = vpop.f32.mrf.mxu0
  %v1357 = vadd.f32 %v1308, %v1356
  %v1358 = vpop.f32.mrf.mxu0
  %v1359 = vadd.f32 %v1310, %v1358
  %1360 = vmatmul.bf16.gmra.mxu0 %v144
  %v1361 = vpop.f32.mrf.mxu0
  %v1362 = vadd.f32 %v1313, %v1361
  %v1363 = vpop.f32.mrf.mxu0
  %v1364 = vadd.f32 %v1315, %v1363
  %1365 = vmatmul.bf16.gmra.mxu0 %v151
  %v1366 = vpop.f32.mrf.mxu0
  %v1367 = vadd.f32 %v1318, %v1366
  %v1368 = vpop.f32.mrf.mxu0
  %v1369 = vadd.f32 %v1320, %v1368
  %1370 = vmatmul.bf16.gmra.mxu0 %v158
  %v1371 = vpop.f32.mrf.mxu0
  %v1372 = vadd.f32 %v1323, %v1371
  %v1373 = vpop.f32.mrf.mxu0
  %v1374 = vadd.f32 %v1325, %v1373
  %1375 = vmatmul.bf16.gmra.mxu0 %v165
  %v1376 = vpop.f32.mrf.mxu0
  %v1377 = vadd.f32 %v1328, %v1376
  %v1378 = vpop.f32.mrf.mxu0
  %v1379 = vadd.f32 %v1330, %v1378
  %1380 = vmatmul.bf16.gmra.mxu0 %v172
  %v1381 = vpop.f32.mrf.mxu0
  %v1382 = vadd.f32 %v1333, %v1381
  %v1383 = vpop.f32.mrf.mxu0
  %v1384 = vadd.f32 %v1335, %v1383
  %1385 = vmatmul.bf16.gmra.mxu0 %v179
  %v1386 = vpop.f32.mrf.mxu0
  %v1387 = vadd.f32 %v1338, %v1386
  %v1388 = vpop.f32.mrf.mxu0
  %v1389 = vadd.f32 %v1340, %v1388
  %1390 = vmatmul.bf16.gmra.mxu0 %v186
  %v1391 = vpop.f32.mrf.mxu0
  %v1392 = vadd.f32 %v1343, %v1391
  %v1393 = vpop.f32.mrf.mxu0
  %v1394 = vadd.f32 %v1345, %v1393
  %1395 = vdwg.mxu0
  %1396 = vmatpush.bf16.msra.mxu0 %v682
  %1397 = vmatpush.bf16.msra.mxu0 %v680
  %1398 = vmatpush.bf16.msra.mxu0 %v678
  %1399 = vmatpush.bf16.msra.mxu0 %v676
  %1400 = vmatpush.bf16.msra.mxu0 %v674
  %1401 = vmatpush.bf16.msra.mxu0 %v672
  %1402 = vmatpush.bf16.msra.mxu0 %v670
  %1403 = vmatpush.bf16.msra.mxu0 %v668
  %1404 = vmatmul.bf16.gmra.mxu0 %v138
  %v1405 = vpop.f32.mrf.mxu0
  %v1406 = vadd.f32 %v1357, %v1405
  %v1407 = vpop.f32.mrf.mxu0
  %v1408 = vadd.f32 %v1359, %v1407
  %1409 = vmatmul.bf16.gmra.mxu0 %v145
  %v1410 = vpop.f32.mrf.mxu0
  %v1411 = vadd.f32 %v1362, %v1410
  %v1412 = vpop.f32.mrf.mxu0
  %v1413 = vadd.f32 %v1364, %v1412
  %1414 = vmatmul.bf16.gmra.mxu0 %v152
  %v1415 = vpop.f32.mrf.mxu0
  %v1416 = vadd.f32 %v1367, %v1415
  %v1417 = vpop.f32.mrf.mxu0
  %v1418 = vadd.f32 %v1369, %v1417
  %1419 = vmatmul.bf16.gmra.mxu0 %v159
  %v1420 = vpop.f32.mrf.mxu0
  %v1421 = vadd.f32 %v1372, %v1420
  %v1422 = vpop.f32.mrf.mxu0
  %v1423 = vadd.f32 %v1374, %v1422
  %1424 = vmatmul.bf16.gmra.mxu0 %v166
  %v1425 = vpop.f32.mrf.mxu0
  %v1426 = vadd.f32 %v1377, %v1425
  %v1427 = vpop.f32.mrf.mxu0
  %v1428 = vadd.f32 %v1379, %v1427
  %1429 = vmatmul.bf16.gmra.mxu0 %v173
  %v1430 = vpop.f32.mrf.mxu0
  %v1431 = vadd.f32 %v1382, %v1430
  %v1432 = vpop.f32.mrf.mxu0
  %v1433 = vadd.f32 %v1384, %v1432
  %1434 = vmatmul.bf16.gmra.mxu0 %v180
  %v1435 = vpop.f32.mrf.mxu0
  %v1436 = vadd.f32 %v1387, %v1435
  %v1437 = vpop.f32.mrf.mxu0
  %v1438 = vadd.f32 %v1389, %v1437
  %1439 = vmatmul.bf16.gmra.mxu0 %v187
  %v1440 = vpop.f32.mrf.mxu0
  %v1441 = vadd.f32 %v1392, %v1440
  %v1442 = vpop.f32.mrf.mxu0
  %v1443 = vadd.f32 %v1394, %v1442
  %1444 = vdwg.mxu0
  %1445 = vmatpush.bf16.msra.mxu0 0
  %1446 = vmatpush.bf16.msra.mxu0 0
  %1447 = vmatpush.bf16.msra.mxu0 0
  %1448 = vmatpush.bf16.msra.mxu0 0
  %1449 = vmatpush.bf16.msra.mxu0 0
  %1450 = vmatpush.bf16.msra.mxu0 0
  %1451 = vmatpush.bf16.msra.mxu0 0
  %1452 = vmatpush.bf16.msra.mxu0 %v684
  %1453 = vmatmul.bf16.gmra.mxu0 %v785
  %v1454 = vpop.f32.mrf.mxu0
  %v1455 = vadd.f32 %v1406, %v1454
  %v1456 = vpop.f32.mrf.mxu0
  %v1457 = vadd.f32 %v1408, %v1456
  %1458 = vmatmul.bf16.gmra.mxu0 %v788
  %v1459 = vpop.f32.mrf.mxu0
  %v1460 = vadd.f32 %v1411, %v1459
  %v1461 = vpop.f32.mrf.mxu0
  %v1462 = vadd.f32 %v1413, %v1461
  %1463 = vmatmul.bf16.gmra.mxu0 %v791
  %v1464 = vpop.f32.mrf.mxu0
  %v1465 = vadd.f32 %v1416, %v1464
  %v1466 = vpop.f32.mrf.mxu0
  %v1467 = vadd.f32 %v1418, %v1466
  %1468 = vmatmul.bf16.gmra.mxu0 %v794
  %v1469 = vpop.f32.mrf.mxu0
  %v1470 = vadd.f32 %v1421, %v1469
  %v1471 = vpop.f32.mrf.mxu0
  %v1472 = vadd.f32 %v1423, %v1471
  %1473 = vmatmul.bf16.gmra.mxu0 %v797
  %v1474 = vpop.f32.mrf.mxu0
  %v1475 = vadd.f32 %v1426, %v1474
  %v1476 = vpop.f32.mrf.mxu0
  %v1477 = vadd.f32 %v1428, %v1476
  %1478 = vmatmul.bf16.gmra.mxu0 %v800
  %v1479 = vpop.f32.mrf.mxu0
  %v1480 = vadd.f32 %v1431, %v1479
  %v1481 = vpop.f32.mrf.mxu0
  %v1482 = vadd.f32 %v1433, %v1481
  %1483 = vmatmul.bf16.gmra.mxu0 %v803
  %v1484 = vpop.f32.mrf.mxu0
  %v1485 = vadd.f32 %v1436, %v1484
  %v1486 = vpop.f32.mrf.mxu0
  %v1487 = vadd.f32 %v1438, %v1486
  %1488 = vmatmul.bf16.gmra.mxu0 %v806
  %v1489 = vpop.f32.mrf.mxu0
  %v1490 = vadd.f32 %v1441, %v1489
  %v1491 = vpop.f32.mrf.mxu0
  %v1492 = vadd.f32 %v1443, %v1491
  %1493 = vdwg.mxu0
  %v1494 = vmax.f32 %v1112, 0.0
  %v1495 = vmax.f32 %v1455, 0.0
  %v1496 = vmax.f32 %v1114, 0.0
  %v1497 = vmax.f32 %v1457, 0.0
  %v1498 = vmax.f32 %v1117, 0.0
  %v1499 = vmax.f32 %v1460, 0.0
  %v1500 = vmax.f32 %v1119, 0.0
  %v1501 = vmax.f32 %v1462, 0.0
  %v1502 = vmax.f32 %v1122, 0.0
  %v1503 = vmax.f32 %v1465, 0.0
  %v1504 = vmax.f32 %v1124, 0.0
  %v1505 = vmax.f32 %v1467, 0.0
  %v1506 = vmax.f32 %v1127, 0.0
  %v1507 = vmax.f32 %v1470, 0.0
  %v1508 = vmax.f32 %v1129, 0.0
  %v1509 = vmax.f32 %v1472, 0.0
  %v1510 = vmax.f32 %v1132, 0.0
  %v1511 = vmax.f32 %v1475, 0.0
  %v1512 = vmax.f32 %v1134, 0.0
  %v1513 = vmax.f32 %v1477, 0.0
  %v1514 = vmax.f32 %v1137, 0.0
  %v1515 = vmax.f32 %v1480, 0.0
  %v1516 = vmax.f32 %v1139, 0.0
  %v1517 = vmax.f32 %v1482, 0.0
  %v1518 = vmax.f32 %v1142, 0.0
  %v1519 = vmax.f32 %v1485, 0.0
  %v1520 = vmax.f32 %v1144, 0.0
  %v1521 = vmax.f32 %v1487, 0.0
  %v1522 = vmax.f32 %v1147, 0.0
  %v1523 = vmax.f32 %v1490, 0.0
  %v1524 = vmax.f32 %v1149, 0.0
  %v1525 = vmax.f32 %v1492, 0.0
  %v1526 = vpack.c.bf16 %v1496, %v1494
  %v1527 = vpack.c.bf16 %v1497, %v1495
  %v1528 = vpack.c.bf16 %v1500, %v1498
  %v1529 = vpack.c.bf16 %v1501, %v1499
  %v1530 = vpack.c.bf16 %v1504, %v1502
  %v1531 = vpack.c.bf16 %v1505, %v1503
  %v1532 = vpack.c.bf16 %v1508, %v1506
  %v1533 = vpack.c.bf16 %v1509, %v1507
  %v1534 = vpack.c.bf16 %v1512, %v1510
  %v1535 = vpack.c.bf16 %v1513, %v1511
  %v1536 = vpack.c.bf16 %v1516, %v1514
  %v1537 = vpack.c.bf16 %v1517, %v1515
  %v1538 = vpack.c.bf16 %v1520, %v1518
  %v1539 = vpack.c.bf16 %v1521, %v1519
  %v1540 = vpack.c.bf16 %v1524, %v1522
  %v1541 = vpack.c.bf16 %v1525, %v1523
  %v1542 = vld [vmem:[%s3] sm:$0xf]
  %v1543 = vld [vmem:[%s3 + $0x4] sm:$0xf]
  %v1544 = vld [vmem:[%s3 + $0x8] sm:$0xf]
  %v1545 = vld [vmem:[%s3 + $0xc] sm:$0xf]
  %v1546 = vld [vmem:[%s3 + $0x10] sm:$0xf]
  %v1547 = vld [vmem:[%s3 + $0x14] sm:$0xf]
  %v1548 = vld [vmem:[%s3 + $0x18] sm:$0xf]
  %v1549 = vld [vmem:[%s3 + $0x1c] sm:$0xf]
  %v1550 = vld [vmem:[%s3 + $0x20] sm:$0xf]
  %v1551 = vld [vmem:[%s3 + $0x24] sm:$0xf]
  %v1552 = vld [vmem:[%s3 + $0x28] sm:$0xf]
  %v1553 = vld [vmem:[%s3 + $0x2c] sm:$0xf]
  %v1554 = vld [vmem:[%s3 + $0x30] sm:$0xf]
  %v1555 = vld [vmem:[%s3 + $0x34] sm:$0xf]
  %v1556 = vld [vmem:[%s3 + $0x38] sm:$0xf]
  %v1557 = vld [vmem:[%s3 + $0x3c] sm:$0xf]
  %v1558 = vld [vmem:[%s3 + $0x40] sm:$0xf]
  %v1559 = vld [vmem:[%s3 + $0x44] sm:$0xf]
  %v1560 = vld [vmem:[%s3 + $0x48] sm:$0xf]
  %v1561 = vld [vmem:[%s3 + $0x4c] sm:$0xf]
  %v1562 = vld [vmem:[%s3 + $0x50] sm:$0xf]
  %v1563 = vld [vmem:[%s3 + $0x54] sm:$0xf]
  %v1564 = vld [vmem:[%s3 + $0x58] sm:$0xf]
  %v1565 = vld [vmem:[%s3 + $0x5c] sm:$0xf]
  %v1566 = vld [vmem:[%s3 + $0x60] sm:$0xf]
  %v1567 = vld [vmem:[%s3 + $0x64] sm:$0xf]
  %v1568 = vld [vmem:[%s3 + $0x68] sm:$0xf]
  %v1569 = vld [vmem:[%s3 + $0x6c] sm:$0xf]
  %v1570 = vld [vmem:[%s3 + $0x70] sm:$0xf]
  %v1571 = vld [vmem:[%s3 + $0x74] sm:$0xf]
  %v1572 = vld [vmem:[%s3 + $0x78] sm:$0xf]
  %v1573 = vld [vmem:[%s3 + $0x7c] sm:$0xf]
  %v1574 = vld [vmem:[%s4] sm:$0x1]
  %v1576 = vperm.slane %v1574, 0
  %v1610 = vunpack.c.l.b16 %v1542
  %v1611 = vunpack.c.l.b16 %v1543
  %v1612 = vunpack.c.l.b16 %v1544
  %v1613 = vunpack.c.l.b16 %v1545
  %v1614 = vunpack.c.l.b16 %v1546
  %v1615 = vunpack.c.l.b16 %v1547
  %v1616 = vunpack.c.l.b16 %v1548
  %v1617 = vunpack.c.l.b16 %v1549
  %v1618 = vunpack.c.l.b16 %v1550
  %v1619 = vunpack.c.l.b16 %v1551
  %v1620 = vunpack.c.l.b16 %v1552
  %v1621 = vunpack.c.l.b16 %v1553
  %v1622 = vunpack.c.l.b16 %v1554
  %v1623 = vunpack.c.l.b16 %v1555
  %v1624 = vunpack.c.l.b16 %v1556
  %v1625 = vunpack.c.l.b16 %v1557
  %v1626 = vunpack.c.l.b16 %v1558
  %v1627 = vunpack.c.l.b16 %v1559
  %v1628 = vunpack.c.l.b16 %v1560
  %v1629 = vunpack.c.l.b16 %v1561
  %v1630 = vunpack.c.l.b16 %v1562
  %v1631 = vunpack.c.l.b16 %v1563
  %v1632 = vunpack.c.l.b16 %v1564
  %v1633 = vunpack.c.l.b16 %v1565
  %v1634 = vunpack.c.l.b16 %v1566
  %v1635 = vunpack.c.l.b16 %v1567
  %v1636 = vunpack.c.l.b16 %v1568
  %v1637 = vunpack.c.l.b16 %v1569
  %v1638 = vunpack.c.l.b16 %v1570
  %v1639 = vunpack.c.l.b16 %v1571
  %v1640 = vunpack.c.l.b16 %v1572
  %v1641 = vunpack.c.l.b16 %v1573
  %v1642 = vpack.c.b16 %v1611, %v1610
  %v1643 = vpack.c.b16 %v1613, %v1612
  %v1644 = vpack.c.b16 %v1615, %v1614
  %v1645 = vpack.c.b16 %v1617, %v1616
  %v1646 = vpack.c.b16 %v1619, %v1618
  %v1647 = vpack.c.b16 %v1621, %v1620
  %v1648 = vpack.c.b16 %v1623, %v1622
  %v1649 = vpack.c.b16 %v1625, %v1624
  %v1650 = vpack.c.b16 %v1627, %v1626
  %v1651 = vpack.c.b16 %v1629, %v1628
  %v1652 = vpack.c.b16 %v1631, %v1630
  %v1653 = vpack.c.b16 %v1633, %v1632
  %v1654 = vpack.c.b16 %v1635, %v1634
  %v1655 = vpack.c.b16 %v1637, %v1636
  %v1656 = vpack.c.b16 %v1639, %v1638
  %v1657 = vpack.c.b16 %v1641, %v1640
  %1674 = vmatpush.bf16.msra.mxu0 %v1649
  %1675 = vmatpush.bf16.msra.mxu0 %v1648
  %1676 = vmatpush.bf16.msra.mxu0 %v1647
  %1677 = vmatpush.bf16.msra.mxu0 %v1646
  %1678 = vmatpush.bf16.msra.mxu0 %v1645
  %1679 = vmatpush.bf16.msra.mxu0 %v1644
  %1680 = vmatpush.bf16.msra.mxu0 %v1643
  %1681 = vmatpush.bf16.msra.mxu0 %v1642
  %1682 = vmatmul.bf16.gmra.mxu0 %v1526
  %v1683 = vpop.f32.mrf.mxu0
  %v1684 = vadd.f32 %v1576, %v1683
  %v1685 = vpop.f32.mrf.mxu0
  %v1686 = vadd.f32 %v1576, %v1685
  %1687 = vmatmul.bf16.gmra.mxu0 %v1528
  %v1688 = vpop.f32.mrf.mxu0
  %v1689 = vadd.f32 %v1576, %v1688
  %v1690 = vpop.f32.mrf.mxu0
  %v1691 = vadd.f32 %v1576, %v1690
  %1692 = vmatmul.bf16.gmra.mxu0 %v1530
  %v1693 = vpop.f32.mrf.mxu0
  %v1694 = vadd.f32 %v1576, %v1693
  %v1695 = vpop.f32.mrf.mxu0
  %v1696 = vadd.f32 %v1576, %v1695
  %1697 = vmatmul.bf16.gmra.mxu0 %v1532
  %v1698 = vpop.f32.mrf.mxu0
  %v1699 = vadd.f32 %v1576, %v1698
  %v1700 = vpop.f32.mrf.mxu0
  %v1701 = vadd.f32 %v1576, %v1700
  %1702 = vmatmul.bf16.gmra.mxu0 %v1534
  %v1703 = vpop.f32.mrf.mxu0
  %v1704 = vadd.f32 %v1576, %v1703
  %v1705 = vpop.f32.mrf.mxu0
  %v1706 = vadd.f32 %v1576, %v1705
  %1707 = vmatmul.bf16.gmra.mxu0 %v1536
  %v1708 = vpop.f32.mrf.mxu0
  %v1709 = vadd.f32 %v1576, %v1708
  %v1710 = vpop.f32.mrf.mxu0
  %v1711 = vadd.f32 %v1576, %v1710
  %1712 = vmatmul.bf16.gmra.mxu0 %v1538
  %v1713 = vpop.f32.mrf.mxu0
  %v1714 = vadd.f32 %v1576, %v1713
  %v1715 = vpop.f32.mrf.mxu0
  %v1716 = vadd.f32 %v1576, %v1715
  %1717 = vmatmul.bf16.gmra.mxu0 %v1540
  %v1718 = vpop.f32.mrf.mxu0
  %v1719 = vadd.f32 %v1576, %v1718
  %v1720 = vpop.f32.mrf.mxu0
  %v1721 = vadd.f32 %v1576, %v1720
  %1722 = vdwg.mxu0
  %1723 = vmatpush.bf16.msra.mxu0 %v1657
  %1724 = vmatpush.bf16.msra.mxu0 %v1656
  %1725 = vmatpush.bf16.msra.mxu0 %v1655
  %1726 = vmatpush.bf16.msra.mxu0 %v1654
  %1727 = vmatpush.bf16.msra.mxu0 %v1653
  %1728 = vmatpush.bf16.msra.mxu0 %v1652
  %1729 = vmatpush.bf16.msra.mxu0 %v1651
  %1730 = vmatpush.bf16.msra.mxu0 %v1650
  %1731 = vmatmul.bf16.gmra.mxu0 %v1527
  %v1732 = vpop.f32.mrf.mxu0
  %v1733 = vadd.f32 %v1684, %v1732
  %v1734 = vpop.f32.mrf.mxu0
  %v1735 = vadd.f32 %v1686, %v1734
  %1736 = vmatmul.bf16.gmra.mxu0 %v1529
  %v1737 = vpop.f32.mrf.mxu0
  %v1738 = vadd.f32 %v1689, %v1737
  %v1739 = vpop.f32.mrf.mxu0
  %v1740 = vadd.f32 %v1691, %v1739
  %1741 = vmatmul.bf16.gmra.mxu0 %v1531
  %v1742 = vpop.f32.mrf.mxu0
  %v1743 = vadd.f32 %v1694, %v1742
  %v1744 = vpop.f32.mrf.mxu0
  %v1745 = vadd.f32 %v1696, %v1744
  %1746 = vmatmul.bf16.gmra.mxu0 %v1533
  %v1747 = vpop.f32.mrf.mxu0
  %v1748 = vadd.f32 %v1699, %v1747
  %v1749 = vpop.f32.mrf.mxu0
  %v1750 = vadd.f32 %v1701, %v1749
  %1751 = vmatmul.bf16.gmra.mxu0 %v1535
  %v1752 = vpop.f32.mrf.mxu0
  %v1753 = vadd.f32 %v1704, %v1752
  %v1754 = vpop.f32.mrf.mxu0
  %v1755 = vadd.f32 %v1706, %v1754
  %1756 = vmatmul.bf16.gmra.mxu0 %v1537
  %v1757 = vpop.f32.mrf.mxu0
  %v1758 = vadd.f32 %v1709, %v1757
  %v1759 = vpop.f32.mrf.mxu0
  %v1760 = vadd.f32 %v1711, %v1759
  %1761 = vmatmul.bf16.gmra.mxu0 %v1539
  %v1762 = vpop.f32.mrf.mxu0
  %v1763 = vadd.f32 %v1714, %v1762
  %v1764 = vpop.f32.mrf.mxu0
  %v1765 = vadd.f32 %v1716, %v1764
  %1766 = vmatmul.bf16.gmra.mxu0 %v1541
  %v1767 = vpop.f32.mrf.mxu0
  %v1768 = vadd.f32 %v1719, %v1767
  %v1769 = vpop.f32.mrf.mxu0
  %v1770 = vadd.f32 %v1721, %v1769
  %1771 = vdwg.mxu0
  %v1772 = vlaneseq
  %v1773 = vand.u32 %v1772, 127
  %vm1774 = vcmp.ge.s32.totalorder %v1773, 20
  %v1775 = vmul.f32 %v1733, 0.5
  %v1776 = vmul.f32 %v1735, 0.5
  %v1777 = vmul.f32 %v1738, 0.5
  %v1778 = vmul.f32 %v1740, 0.5
  %v1779 = vmul.f32 %v1743, 0.5
  %v1780 = vmul.f32 %v1745, 0.5
  %v1781 = vmul.f32 %v1748, 0.5
  %v1782 = vmul.f32 %v1750, 0.5
  %v1783 = vmul.f32 %v1753, 0.5
  %v1784 = vmul.f32 %v1755, 0.5
  %v1785 = vmul.f32 %v1758, 0.5
  %v1786 = vmul.f32 %v1760, 0.5
  %v1787 = vmul.f32 %v1763, 0.5
  %v1788 = vmul.f32 %v1765, 0.5
  %v1789 = vmul.f32 %v1768, 0.5
  %v1790 = vmul.f32 %v1770, 0.5
  %v1791 = vmul.f32 %v1775, 1.442695
  %v1792 = vpow.pop %v1791
  %v1793 = vmul.f32 %v1776, 1.442695
  %v1794 = vpow.pop %v1793
  %v1795 = vmul.f32 %v1777, 1.442695
  %v1796 = vpow.pop %v1795
  %v1797 = vmul.f32 %v1778, 1.442695
  %v1798 = vpow.pop %v1797
  %v1799 = vmul.f32 %v1779, 1.442695
  %v1800 = vpow.pop %v1799
  %v1801 = vmul.f32 %v1780, 1.442695
  %v1802 = vpow.pop %v1801
  %v1803 = vmul.f32 %v1781, 1.442695
  %v1804 = vpow.pop %v1803
  %v1805 = vmul.f32 %v1782, 1.442695
  %v1806 = vpow.pop %v1805
  %v1807 = vmul.f32 %v1783, 1.442695
  %v1808 = vpow.pop %v1807
  %v1809 = vmul.f32 %v1784, 1.442695
  %v1810 = vpow.pop %v1809
  %v1811 = vmul.f32 %v1785, 1.442695
  %v1812 = vpow.pop %v1811
  %v1813 = vmul.f32 %v1786, 1.442695
  %v1814 = vpow.pop %v1813
  %v1815 = vmul.f32 %v1787, 1.442695
  %v1816 = vpow.pop %v1815
  %v1817 = vmul.f32 %v1788, 1.442695
  %v1818 = vpow.pop %v1817
  %v1819 = vmul.f32 %v1789, 1.442695
  %v1820 = vpow.pop %v1819
  %v1821 = vmul.f32 %v1790, 1.442695
  %v1822 = vpow.pop %v1821
  %v1823 = vsel %vm1774, %v1792, %v1733
  %v1824 = vsel %vm1774, %v1794, %v1735
  %v1825 = vsel %vm1774, %v1796, %v1738
  %v1826 = vsel %vm1774, %v1798, %v1740
  %v1827 = vsel %vm1774, %v1800, %v1743
  %v1828 = vsel %vm1774, %v1802, %v1745
  %v1829 = vsel %vm1774, %v1804, %v1748
  %v1830 = vsel %vm1774, %v1806, %v1750
  %v1831 = vsel %vm1774, %v1808, %v1753
  %v1832 = vsel %vm1774, %v1810, %v1755
  %v1833 = vsel %vm1774, %v1812, %v1758
  %v1834 = vsel %vm1774, %v1814, %v1760
  %v1835 = vsel %vm1774, %v1816, %v1763
  %v1836 = vsel %vm1774, %v1818, %v1765
  %v1837 = vsel %vm1774, %v1820, %v1768
  %v1838 = vsel %vm1774, %v1822, %v1770
  %1839 = vst [vmem:[%s5] sm:$0xff] %v1823
  %1840 = vst [vmem:[%s5 + $0x8] sm:$0xff] %v1824
  %1841 = vst [vmem:[%s5 + $0x10] sm:$0xff] %v1825
  %1842 = vst [vmem:[%s5 + $0x18] sm:$0xff] %v1826
  %1843 = vst [vmem:[%s5 + $0x20] sm:$0xff] %v1827
  %1844 = vst [vmem:[%s5 + $0x28] sm:$0xff] %v1828
  %1845 = vst [vmem:[%s5 + $0x30] sm:$0xff] %v1829
  %1846 = vst [vmem:[%s5 + $0x38] sm:$0xff] %v1830
  %1847 = vst [vmem:[%s5 + $0x40] sm:$0xff] %v1831
  %1848 = vst [vmem:[%s5 + $0x48] sm:$0xff] %v1832
  %1849 = vst [vmem:[%s5 + $0x50] sm:$0xff] %v1833
  %1850 = vst [vmem:[%s5 + $0x58] sm:$0xff] %v1834
  %1851 = vst [vmem:[%s5 + $0x60] sm:$0xff] %v1835
  %1852 = vst [vmem:[%s5 + $0x68] sm:$0xff] %v1836
  %1853 = vst [vmem:[%s5 + $0x70] sm:$0xff] %v1837
  %1854 = vst [vmem:[%s5 + $0x78] sm:$0xff] %v1838
  // Predicated region
  $region22: #{encoder_forward.1} parent=0 // pred_check
    _
  $region23: #{encoder_forward.1} parent=0 // pred_check_branch
    %1856 = sbr.rel (0) target = $region25
  $region24: #{encoder_forward.1} parent=0 // pred_region
    _
  $region25: #{encoder_forward.1} parent=0 // pred_fallthru
    _
  // Predicated region
  $region26: #{encoder_forward.1} parent=0 // pred_check
    _
  $region27: #{encoder_forward.1} parent=0 // pred_check_branch
    %1858 = sbr.rel (0) target = $region29
  $region28: #{encoder_forward.1} parent=0 // pred_region
    _
  $region29: #{encoder_forward.1} parent=0 // pred_fallthru
    _

</llo_original>
